<compile_context>
chip_gen: v7x
topology: tpu7x:2x2x1
jax: 0.10.0
libtpu: 0.0.40
codegen_flags: <defaults>
</compile_context>

<pallas_src>
import functools

import jax
import jax.numpy as jnp
from jax.experimental import pallas as pl
from jax.experimental.pallas import tpu as pltpu


def _downsample_kernel(x_ref, p_ref, w_ref, b_ref, o_ref, *, rb, W, Wo):
    # x_ref : [1, Cin, rb*2W]  -- rb pooled rows' worth of raw input (2*rb raw rows),
    #                             spatial flattened row-major on the lane axis
    # p_ref : [2W, Wo]         -- shared per-pooled-row 2x2 avg-pool matrix (0.25 entries)
    # w_ref : [Cout, Cin]      -- 1x1 conv weight (x.dtype)
    # b_ref : [Cout, 1]        -- conv bias (f32)
    # o_ref : [1, Cout, rb*Wo] -- NCHW output block, spatial flattened (lane-dense)
    x = x_ref[0]                                                       # [Cin, rb*2W]
    p = p_ref[...]                                                     # [2W, Wo]
    # 2x2 average pool: one small MXU matmul per pooled row against the SHARED
    # [2W, Wo] constant (0.25 divisor folded in).  Static lane slices, f32 accumulate,
    # result cast back to x.dtype so the conv matmul runs at native (bf16) MXU rate.
    chunks = []
    for i in range(rb):                                                # static unroll
        xi = x[:, i * 2 * W:(i + 1) * 2 * W]                           # [Cin, 2W]
        pi = jnp.dot(xi, p, preferred_element_type=jnp.float32)        # [Cin, Wo]
        chunks.append(pi.astype(x.dtype))
    pooled = chunks[0] if rb == 1 else jnp.concatenate(chunks, axis=1)  # [Cin, rb*Wo]
    # 1x1 conv == channel matmul on the MXU; single lane-dense output slab.
    y = jnp.dot(w_ref[...], pooled, preferred_element_type=jnp.float32)  # [Cout, rb*Wo]
    y = y + b_ref[...]
    o_ref[0] = y.astype(o_ref.dtype)


def _pool_matrix(W, Wo, dtype):
    """[2W, Wo]: flat (raw row 2i | raw row 2i+1) -> pooled row i, with x0.25 folded in."""
    u = jnp.arange(2 * W)
    j = jnp.arange(Wo)
    hit = ((u % W)[:, None] // 2) == j[None, :]
    return (0.25 * hit.astype(jnp.float32)).astype(dtype)   # 0.25 exact in bf16 / f32


def _pick_row_block(N, Ho, W, Wo, Cin, Cout, itemsize, budget=36 << 20):
    """Pooled rows per grid step.

    Constraints: rb | Ho; TPU tiling (last block dim a multiple of 128 or the full
    array dim, for both the input block and the lane-dense output slab); estimated
    VMEM (double-buffered x/out blocks + f32 pool intermediates) under `budget`
    so the kernel stays well inside v7x's 64 MiB physical VMEM while still using
    the multi-MiB blocks that reach the HBM roofline on v5e/v6e.
    Preference: >=4 (and even) total grid steps so both v7x TensorCores get
    balanced work, then >=2, then biggest block; >=1 KiB per-channel DMA segments
    preferred."""
    def shape_ok(rb):
        return rb == Ho or (rb * 2 * W % 128 == 0 and rb * Wo % 128 == 0)

    def vmem_bytes(rb):
        x_blk = Cin * rb * 2 * W * itemsize          # double-buffered input block
        o_blk = Cout * rb * Wo * itemsize            # double-buffered output block
        tmp = Cin * rb * Wo * (4 + itemsize)         # f32 pool accum + cast copy
        return 2 * x_blk + 2 * o_blk + tmp

    divisors = [d for d in range(Ho, 0, -1) if Ho % d == 0]
    valid = [rb for rb in divisors if shape_ok(rb) and vmem_bytes(rb) <= budget]
    if not valid:
        # Smallest legal tile even if over budget (Mosaic's vmem limit still guards).
        # TODO(synk): finer (sub-row / channel-split) tiling for extreme Cin*W.
        valid = [min(rb for rb in divisors if shape_ok(rb))]

    def steps(rb):
        return N * (Ho // rb)

    def seg_ok(rb):  # per-channel contiguous DMA segment >= 1 KiB
        return rb * 2 * W * itemsize >= 1024

    for min_steps, want_even, want_seg in (
            (4, True, True), (4, True, False), (2, True, False),
            (2, False, False), (1, False, False)):
        for rb in valid:                              # descending block size
            s = steps(rb)
            if s >= min_steps and (s % 2 == 0 or not want_even) and (seg_ok(rb) or not want_seg):
                return rb
    return valid[0]


def downsample(x_nchw, w, b, *, row_block=None):
    """Fused AvgPool2d(2,2,ceil_mode) + 1x1 Conv2d (bias).

    x_nchw: [N, Cin, H, W] (PyTorch layout)
    w     : [Cout, Cin, 1, 1] (PyTorch Conv2d weight) or [Cout, Cin]
    b     : [Cout]
    """
    N, Cin, H, W = x_nchw.shape
    if w.ndim == 4:
        assert w.shape[2:] == (1, 1), f"expected 1x1 conv weight, got {w.shape}"
        w = w.reshape(w.shape[0], w.shape[1])
    Cout, w_cin = w.shape
    assert w_cin == Cin, f"weight Cin mismatch: {w.shape} vs Cin={Cin}"
    assert b.shape == (Cout,), b.shape
    # TODO(synk): ceil_mode pooling with odd H/W (clipped boundary windows,
    # count_include_pad=False divisor) not implemented; even spatial dims assumed.
    assert H % 2 == 0 and W % 2 == 0, "kernel handles even H/W only"
    Ho, Wo = H // 2, W // 2

    dtype = x_nchw.dtype
    itemsize = jnp.dtype(dtype).itemsize
    rb = (row_block if row_block is not None
          else _pick_row_block(N, Ho, W, Wo, Cin, Cout, itemsize))
    assert Ho % rb == 0
    n_rblk = Ho // rb

    x_flat = x_nchw.reshape(N, Cin, H * W)        # free contiguous reshape (no HBM pass)
    pmat = _pool_matrix(W, Wo, dtype)             # tiny shared constant (rb-independent)
    w2 = w.astype(dtype)                          # native bf16 MXU operands when x is bf16
    b2 = b.astype(jnp.float32).reshape(Cout, 1)

    # Useful work only: pool ~8 flops per pooled element per channel, conv 2*Cin MACs.
    flops = N * Ho * Wo * (8 * Cin + 2 * Cout * Cin)
    bytes_accessed = (N * Cin * H * W * itemsize
                      + N * Cout * Ho * Wo * itemsize
                      + pmat.size * itemsize + w2.size * itemsize + b2.size * 4)

    kernel = functools.partial(_downsample_kernel, rb=rb, W=W, Wo=Wo)

    def call(single_buffer_consts):
        const_kw = (dict(pipeline_mode=pl.Buffered(1))   # constants: no double-buffering
                    if single_buffer_consts else {})
        out = pl.pallas_call(
            kernel,
            out_shape=jax.ShapeDtypeStruct((N, Cout, Ho * Wo), dtype),
            grid=(N, n_rblk),
            in_specs=[
                pl.BlockSpec((1, Cin, rb * 2 * W), lambda n, r: (n, 0, r)),
                pl.BlockSpec((2 * W, Wo), lambda n, r: (0, 0), **const_kw),
                pl.BlockSpec((Cout, Cin), lambda n, r: (0, 0), **const_kw),
                pl.BlockSpec((Cout, 1), lambda n, r: (0, 0), **const_kw),
            ],
            out_specs=pl.BlockSpec((1, Cout, rb * Wo), lambda n, r: (n, 0, r)),
            compiler_params=pltpu.CompilerParams(
                dimension_semantics=("parallel", "parallel"),
                vmem_limit_bytes=48 * 1024 * 1024),
            cost_estimate=pl.CostEstimate(
                flops=flops, transcendentals=0, bytes_accessed=bytes_accessed),
        )(x_flat, pmat, w2, b2)
        return jax.block_until_ready(out)

    try:
        out_flat = call(True)
    except Exception:
        # pl.Buffered(1) (single-buffered constants) not supported on this JAX
        # version -> fall back to default double-buffering (constants are tiny now).
        out_flat = call(False)

    return out_flat.reshape(N, Cout, Ho, Wo)      # free contiguous reshape back to NCHW


def _reference(x_nchw, w, b):
    # plain-JAX reference: avgpool 2x2 stride 2 (even dims) then 1x1 conv + bias
    N, Cin, H, W = x_nchw.shape
    if w.ndim == 4:
        w = w.reshape(w.shape[0], w.shape[1])
    pooled = x_nchw.reshape(N, Cin, H // 2, 2, W // 2, 2).mean(axis=(3, 5))  # [N,Cin,Ho,Wo]
    return jnp.einsum("oc,nchw->nohw", w, pooled) + b[None, :, None, None]


if __name__ == "__main__":
    key = jax.random.PRNGKey(0)
    k_x, k_w, k_b = jax.random.split(key, 3)

    # Downsample(in_chs=4, out_chs=8, stride=2, dilation=1)
    N, Cin, H, W = 2, 4, 16, 16
    Cout = 8

    x = jax.random.normal(k_x, (N, Cin, H, W), dtype=jnp.float32)
    # deterministic synthetic parameters, PyTorch Conv2d weight layout [Cout, Cin, 1, 1]
    w = jax.random.normal(k_w, (Cout, Cin, 1, 1), dtype=jnp.float32) * 0.1
    b = jax.random.normal(k_b, (Cout,), dtype=jnp.float32) * 0.1

    # f32 path
    out = downsample(x, w, b)
    jax.block_until_ready(out)
    ref = _reference(x, w, b)
    assert out.shape == (N, Cout, H // 2, W // 2), out.shape
    assert jnp.allclose(out, ref, atol=1e-4, rtol=1e-4), "f32 mismatch vs reference"

    # bf16 path (native bf16 MXU operands, f32 accumulation)
    xb = x.astype(jnp.bfloat16)
    out_bf16 = downsample(xb, w, b)
    jax.block_until_ready(out_bf16)
    ref_bf16 = _reference(xb.astype(jnp.float32), w, b)
    assert out_bf16.dtype == jnp.bfloat16
    assert jnp.allclose(out_bf16.astype(jnp.float32), ref_bf16, atol=5e-2, rtol=5e-2), \
        "bf16 mismatch vs reference"

    print("KERNEL_OK")
</pallas_src>

<mosaic_0001>
module attributes {stable_mosaic.version = 11 : i64} {
  func.func @_downsample_kernel(%arg0: i32, %arg1: i32, %arg2: memref<1x4x256xf32, #tpu.memory_space<vmem>>, %arg3: memref<32x8xf32, #tpu.memory_space<vmem>>, %arg4: memref<8x4xf32, #tpu.memory_space<vmem>>, %arg5: memref<8x1xf32, #tpu.memory_space<vmem>>, %arg6: memref<1x8x64xf32, #tpu.memory_space<vmem>>) attributes {dimension_semantics = [#tpu.dimension_semantics<parallel>, #tpu.dimension_semantics<parallel>], iteration_bounds = array<i64: 2, 1>, scalar_prefetch = 0 : i64, scratch_operands = 0 : i64, tpu.core_type = #tpu.core_type<tc>, window_params = [{transform_indices = @transform_0, window_bounds = array<i64: 1, 4, 256>}, {pipeline_mode = #tpu.pipeline_mode<synchronous>, transform_indices = @transform_1, window_bounds = array<i64: 32, 8>}, {pipeline_mode = #tpu.pipeline_mode<synchronous>, transform_indices = @transform_2, window_bounds = array<i64: 8, 4>}, {pipeline_mode = #tpu.pipeline_mode<synchronous>, transform_indices = @transform_3, window_bounds = array<i64: 8, 1>}, {transform_indices = @transform_4, window_bounds = array<i64: 1, 8, 64>}]} {
    %c0 = arith.constant 0 : index
    %c0_0 = arith.constant 0 : index
    %c0_1 = arith.constant 0 : index
    %0 = vector.load %arg2[%c0, %c0_0, %c0_1] : memref<1x4x256xf32, #tpu.memory_space<vmem>>, vector<1x4x256xf32>
    %1 = vector.shape_cast %0 : vector<1x4x256xf32> to vector<4x256xf32>
    %c0_2 = arith.constant 0 : index
    %c0_3 = arith.constant 0 : index
    %2 = vector.load %arg3[%c0_2, %c0_3] : memref<32x8xf32, #tpu.memory_space<vmem>>, vector<32x8xf32>
    %3 = vector.extract_strided_slice %1 {offsets = [0, 0], sizes = [4, 32], strides = [1, 1]} : vector<4x256xf32> to vector<4x32xf32>
    %cst = arith.constant dense<0.000000e+00> : vector<4x8xf32>
    %4 = tpu.matmul %3, %2, %cst {dimension_numbers = #tpu.dot_dimension_numbers<[1], [0], [0], [1], [0, 0, 1, 1], [], []>} : vector<4x32xf32>, vector<32x8xf32>, vector<4x8xf32> -> vector<4x8xf32>
    %5 = vector.extract_strided_slice %1 {offsets = [0, 32], sizes = [4, 32], strides = [1, 1]} : vector<4x256xf32> to vector<4x32xf32>
    %cst_4 = arith.constant dense<0.000000e+00> : vector<4x8xf32>
    %6 = tpu.matmul %5, %2, %cst_4 {dimension_numbers = #tpu.dot_dimension_numbers<[1], [0], [0], [1], [0, 0, 1, 1], [], []>} : vector<4x32xf32>, vector<32x8xf32>, vector<4x8xf32> -> vector<4x8xf32>
    %7 = vector.extract_strided_slice %1 {offsets = [0, 64], sizes = [4, 32], strides = [1, 1]} : vector<4x256xf32> to vector<4x32xf32>
    %cst_5 = arith.constant dense<0.000000e+00> : vector<4x8xf32>
    %8 = tpu.matmul %7, %2, %cst_5 {dimension_numbers = #tpu.dot_dimension_numbers<[1], [0], [0], [1], [0, 0, 1, 1], [], []>} : vector<4x32xf32>, vector<32x8xf32>, vector<4x8xf32> -> vector<4x8xf32>
    %9 = vector.extract_strided_slice %1 {offsets = [0, 96], sizes = [4, 32], strides = [1, 1]} : vector<4x256xf32> to vector<4x32xf32>
    %cst_6 = arith.constant dense<0.000000e+00> : vector<4x8xf32>
    %10 = tpu.matmul %9, %2, %cst_6 {dimension_numbers = #tpu.dot_dimension_numbers<[1], [0], [0], [1], [0, 0, 1, 1], [], []>} : vector<4x32xf32>, vector<32x8xf32>, vector<4x8xf32> -> vector<4x8xf32>
    %11 = vector.extract_strided_slice %1 {offsets = [0, 128], sizes = [4, 32], strides = [1, 1]} : vector<4x256xf32> to vector<4x32xf32>
    %cst_7 = arith.constant dense<0.000000e+00> : vector<4x8xf32>
    %12 = tpu.matmul %11, %2, %cst_7 {dimension_numbers = #tpu.dot_dimension_numbers<[1], [0], [0], [1], [0, 0, 1, 1], [], []>} : vector<4x32xf32>, vector<32x8xf32>, vector<4x8xf32> -> vector<4x8xf32>
    %13 = vector.extract_strided_slice %1 {offsets = [0, 160], sizes = [4, 32], strides = [1, 1]} : vector<4x256xf32> to vector<4x32xf32>
    %cst_8 = arith.constant dense<0.000000e+00> : vector<4x8xf32>
    %14 = tpu.matmul %13, %2, %cst_8 {dimension_numbers = #tpu.dot_dimension_numbers<[1], [0], [0], [1], [0, 0, 1, 1], [], []>} : vector<4x32xf32>, vector<32x8xf32>, vector<4x8xf32> -> vector<4x8xf32>
    %15 = vector.extract_strided_slice %1 {offsets = [0, 192], sizes = [4, 32], strides = [1, 1]} : vector<4x256xf32> to vector<4x32xf32>
    %cst_9 = arith.constant dense<0.000000e+00> : vector<4x8xf32>
    %16 = tpu.matmul %15, %2, %cst_9 {dimension_numbers = #tpu.dot_dimension_numbers<[1], [0], [0], [1], [0, 0, 1, 1], [], []>} : vector<4x32xf32>, vector<32x8xf32>, vector<4x8xf32> -> vector<4x8xf32>
    %17 = vector.extract_strided_slice %1 {offsets = [0, 224], sizes = [4, 32], strides = [1, 1]} : vector<4x256xf32> to vector<4x32xf32>
    %cst_10 = arith.constant dense<0.000000e+00> : vector<4x8xf32>
    %18 = tpu.matmul %17, %2, %cst_10 {dimension_numbers = #tpu.dot_dimension_numbers<[1], [0], [0], [1], [0, 0, 1, 1], [], []>} : vector<4x32xf32>, vector<32x8xf32>, vector<4x8xf32> -> vector<4x8xf32>
    %19 = tpu.concatenate %4, %6, %8, %10, %12, %14, %16, %18 in 1 : vector<4x8xf32>, vector<4x8xf32>, vector<4x8xf32>, vector<4x8xf32>, vector<4x8xf32>, vector<4x8xf32>, vector<4x8xf32>, vector<4x8xf32> -> vector<4x64xf32>
    %c0_11 = arith.constant 0 : index
    %c0_12 = arith.constant 0 : index
    %20 = vector.load %arg4[%c0_11, %c0_12] : memref<8x4xf32, #tpu.memory_space<vmem>>, vector<8x4xf32>
    %cst_13 = arith.constant dense<0.000000e+00> : vector<8x64xf32>
    %21 = tpu.matmul %20, %19, %cst_13 {dimension_numbers = #tpu.dot_dimension_numbers<[1], [0], [0], [1], [0, 0, 1, 1], [], []>} : vector<8x4xf32>, vector<4x64xf32>, vector<8x64xf32> -> vector<8x64xf32>
    %c0_14 = arith.constant 0 : index
    %c0_15 = arith.constant 0 : index
    %22 = vector.load %arg5[%c0_14, %c0_15] : memref<8x1xf32, #tpu.memory_space<vmem>>, vector<8x1xf32>
    %23 = vector.broadcast %22 : vector<8x1xf32> to vector<8x64xf32>
    %24 = arith.addf %21, %23 : vector<8x64xf32>
    %c0_16 = arith.constant 0 : index
    %c0_17 = arith.constant 0 : index
    %c0_18 = arith.constant 0 : index
    %25 = vector.load %arg6[%c0_16, %c0_17, %c0_18] : memref<1x8x64xf32, #tpu.memory_space<vmem>>, vector<1x8x64xf32>
    %26 = vector.shape_cast %25 : vector<1x8x64xf32> to vector<8x64xf32>
    %27 = vector.shape_cast %24 : vector<8x64xf32> to vector<1x8x64xf32>
    tpu.vector_store %arg6[%c0_16, %c0_17, %c0_18], %27 {strides = array<i32>} : memref<1x8x64xf32, #tpu.memory_space<vmem>>, vector<1x8x64xf32>,
    return
  }
  func.func @transform_0(%arg0: i32, %arg1: i32) -> (i32, i32, i32) {
    %c0_i32 = arith.constant 0 : i32
    %c0_i32_0 = arith.constant 0 : i32
    return %arg0, %c0_i32, %arg1 : i32, i32, i32
  }
  func.func @transform_1(%arg0: i32, %arg1: i32) -> (i32, i32) {
    %c0_i32 = arith.constant 0 : i32
    %c0_i32_0 = arith.constant 0 : i32
    %c0_i32_1 = arith.constant 0 : i32
    return %c0_i32, %c0_i32_0 : i32, i32
  }
  func.func @transform_2(%arg0: i32, %arg1: i32) -> (i32, i32) {
    %c0_i32 = arith.constant 0 : i32
    %c0_i32_0 = arith.constant 0 : i32
    %c0_i32_1 = arith.constant 0 : i32
    return %c0_i32, %c0_i32_0 : i32, i32
  }
  func.func @transform_3(%arg0: i32, %arg1: i32) -> (i32, i32) {
    %c0_i32 = arith.constant 0 : i32
    %c0_i32_0 = arith.constant 0 : i32
    %c0_i32_1 = arith.constant 0 : i32
    return %c0_i32, %c0_i32_0 : i32, i32
  }
  func.func @transform_4(%arg0: i32, %arg1: i32) -> (i32, i32, i32) {
    %c0_i32 = arith.constant 0 : i32
    %c0_i32_0 = arith.constant 0 : i32
    return %arg0, %c0_i32, %arg1 : i32, i32, i32
  }
}

module attributes {stable_mosaic.version = 11 : i64} {
  func.func @_downsample_kernel(%arg0: i32, %arg1: i32, %arg2: memref<1x4x256xf32, #tpu.memory_space<vmem>>, %arg3: memref<32x8xf32, #tpu.memory_space<vmem>>, %arg4: memref<8x4xf32, #tpu.memory_space<vmem>>, %arg5: memref<8x1xf32, #tpu.memory_space<vmem>>, %arg6: memref<1x8x64xf32, #tpu.memory_space<vmem>>) attributes {dimension_semantics = [#tpu.dimension_semantics<parallel>, #tpu.dimension_semantics<parallel>], iteration_bounds = array<i64: 2, 1>, scalar_prefetch = 0 : i64, scratch_operands = 0 : i64, tpu.core_type = #tpu.core_type<tc>, window_params = [{transform_indices = @transform_0, window_bounds = array<i64: 1, 4, 256>}, {pipeline_mode = #tpu.pipeline_mode<synchronous>, transform_indices = @transform_1, window_bounds = array<i64: 32, 8>}, {pipeline_mode = #tpu.pipeline_mode<synchronous>, transform_indices = @transform_2, window_bounds = array<i64: 8, 4>}, {pipeline_mode = #tpu.pipeline_mode<synchronous>, transform_indices = @transform_3, window_bounds = array<i64: 8, 1>}, {transform_indices = @transform_4, window_bounds = array<i64: 1, 8, 64>}]} {
    %c0 = arith.constant 0 : index
    %c0_0 = arith.constant 0 : index
    %c0_1 = arith.constant 0 : index
    %0 = vector.load %arg2[%c0, %c0_0, %c0_1] : memref<1x4x256xf32, #tpu.memory_space<vmem>>, vector<1x4x256xf32>
    %1 = vector.shape_cast %0 : vector<1x4x256xf32> to vector<4x256xf32>
    %c0_2 = arith.constant 0 : index
    %c0_3 = arith.constant 0 : index
    %2 = vector.load %arg3[%c0_2, %c0_3] : memref<32x8xf32, #tpu.memory_space<vmem>>, vector<32x8xf32>
    %3 = vector.extract_strided_slice %1 {offsets = [0, 0], sizes = [4, 32], strides = [1, 1]} : vector<4x256xf32> to vector<4x32xf32>
    %cst = arith.constant dense<0.000000e+00> : vector<4x8xf32>
    %4 = tpu.matmul %3, %2, %cst {dimension_numbers = #tpu.dot_dimension_numbers<[1], [0], [0], [1], [0, 0, 1, 1], [], []>} : vector<4x32xf32>, vector<32x8xf32>, vector<4x8xf32> -> vector<4x8xf32>
    %5 = vector.extract_strided_slice %1 {offsets = [0, 32], sizes = [4, 32], strides = [1, 1]} : vector<4x256xf32> to vector<4x32xf32>
    %cst_4 = arith.constant dense<0.000000e+00> : vector<4x8xf32>
    %6 = tpu.matmul %5, %2, %cst_4 {dimension_numbers = #tpu.dot_dimension_numbers<[1], [0], [0], [1], [0, 0, 1, 1], [], []>} : vector<4x32xf32>, vector<32x8xf32>, vector<4x8xf32> -> vector<4x8xf32>
    %7 = vector.extract_strided_slice %1 {offsets = [0, 64], sizes = [4, 32], strides = [1, 1]} : vector<4x256xf32> to vector<4x32xf32>
    %cst_5 = arith.constant dense<0.000000e+00> : vector<4x8xf32>
    %8 = tpu.matmul %7, %2, %cst_5 {dimension_numbers = #tpu.dot_dimension_numbers<[1], [0], [0], [1], [0, 0, 1, 1], [], []>} : vector<4x32xf32>, vector<32x8xf32>, vector<4x8xf32> -> vector<4x8xf32>
    %9 = vector.extract_strided_slice %1 {offsets = [0, 96], sizes = [4, 32], strides = [1, 1]} : vector<4x256xf32> to vector<4x32xf32>
    %cst_6 = arith.constant dense<0.000000e+00> : vector<4x8xf32>
    %10 = tpu.matmul %9, %2, %cst_6 {dimension_numbers = #tpu.dot_dimension_numbers<[1], [0], [0], [1], [0, 0, 1, 1], [], []>} : vector<4x32xf32>, vector<32x8xf32>, vector<4x8xf32> -> vector<4x8xf32>
    %11 = vector.extract_strided_slice %1 {offsets = [0, 128], sizes = [4, 32], strides = [1, 1]} : vector<4x256xf32> to vector<4x32xf32>
    %cst_7 = arith.constant dense<0.000000e+00> : vector<4x8xf32>
    %12 = tpu.matmul %11, %2, %cst_7 {dimension_numbers = #tpu.dot_dimension_numbers<[1], [0], [0], [1], [0, 0, 1, 1], [], []>} : vector<4x32xf32>, vector<32x8xf32>, vector<4x8xf32> -> vector<4x8xf32>
    %13 = vector.extract_strided_slice %1 {offsets = [0, 160], sizes = [4, 32], strides = [1, 1]} : vector<4x256xf32> to vector<4x32xf32>
    %cst_8 = arith.constant dense<0.000000e+00> : vector<4x8xf32>
    %14 = tpu.matmul %13, %2, %cst_8 {dimension_numbers = #tpu.dot_dimension_numbers<[1], [0], [0], [1], [0, 0, 1, 1], [], []>} : vector<4x32xf32>, vector<32x8xf32>, vector<4x8xf32> -> vector<4x8xf32>
    %15 = vector.extract_strided_slice %1 {offsets = [0, 192], sizes = [4, 32], strides = [1, 1]} : vector<4x256xf32> to vector<4x32xf32>
    %cst_9 = arith.constant dense<0.000000e+00> : vector<4x8xf32>
    %16 = tpu.matmul %15, %2, %cst_9 {dimension_numbers = #tpu.dot_dimension_numbers<[1], [0], [0], [1], [0, 0, 1, 1], [], []>} : vector<4x32xf32>, vector<32x8xf32>, vector<4x8xf32> -> vector<4x8xf32>
    %17 = vector.extract_strided_slice %1 {offsets = [0, 224], sizes = [4, 32], strides = [1, 1]} : vector<4x256xf32> to vector<4x32xf32>
    %cst_10 = arith.constant dense<0.000000e+00> : vector<4x8xf32>
    %18 = tpu.matmul %17, %2, %cst_10 {dimension_numbers = #tpu.dot_dimension_numbers<[1], [0], [0], [1], [0, 0, 1, 1], [], []>} : vector<4x32xf32>, vector<32x8xf32>, vector<4x8xf32> -> vector<4x8xf32>
    %19 = tpu.concatenate %4, %6, %8, %10, %12, %14, %16, %18 in 1 : vector<4x8xf32>, vector<4x8xf32>, vector<4x8xf32>, vector<4x8xf32>, vector<4x8xf32>, vector<4x8xf32>, vector<4x8xf32>, vector<4x8xf32> -> vector<4x64xf32>
    %c0_11 = arith.constant 0 : index
    %c0_12 = arith.constant 0 : index
    %20 = vector.load %arg4[%c0_11, %c0_12] : memref<8x4xf32, #tpu.memory_space<vmem>>, vector<8x4xf32>
    %cst_13 = arith.constant dense<0.000000e+00> : vector<8x64xf32>
    %21 = tpu.matmul %20, %19, %cst_13 {dimension_numbers = #tpu.dot_dimension_numbers<[1], [0], [0], [1], [0, 0, 1, 1], [], []>} : vector<8x4xf32>, vector<4x64xf32>, vector<8x64xf32> -> vector<8x64xf32>
    %c0_14 = arith.constant 0 : index
    %c0_15 = arith.constant 0 : index
    %22 = vector.load %arg5[%c0_14, %c0_15] : memref<8x1xf32, #tpu.memory_space<vmem>>, vector<8x1xf32>
    %23 = vector.broadcast %22 : vector<8x1xf32> to vector<8x64xf32>
    %24 = arith.addf %21, %23 : vector<8x64xf32>
    %c0_16 = arith.constant 0 : index
    %c0_17 = arith.constant 0 : index
    %c0_18 = arith.constant 0 : index
    %25 = vector.load %arg6[%c0_16, %c0_17, %c0_18] : memref<1x8x64xf32, #tpu.memory_space<vmem>>, vector<1x8x64xf32>
    %26 = vector.shape_cast %25 : vector<1x8x64xf32> to vector<8x64xf32>
    %27 = vector.shape_cast %24 : vector<8x64xf32> to vector<1x8x64xf32>
    tpu.vector_store %arg6[%c0_16, %c0_17, %c0_18], %27 {strides = array<i32>} : memref<1x8x64xf32, #tpu.memory_space<vmem>>, vector<1x8x64xf32>,
    return
  }
  func.func @transform_0(%arg0: i32, %arg1: i32) -> (i32, i32, i32) {
    %c0_i32 = arith.constant 0 : i32
    %c0_i32_0 = arith.constant 0 : i32
    return %arg0, %c0_i32, %arg1 : i32, i32, i32
  }
  func.func @transform_1(%arg0: i32, %arg1: i32) -> (i32, i32) {
    %c0_i32 = arith.constant 0 : i32
    %c0_i32_0 = arith.constant 0 : i32
    %c0_i32_1 = arith.constant 0 : i32
    return %c0_i32, %c0_i32_0 : i32, i32
  }
  func.func @transform_2(%arg0: i32, %arg1: i32) -> (i32, i32) {
    %c0_i32 = arith.constant 0 : i32
    %c0_i32_0 = arith.constant 0 : i32
    %c0_i32_1 = arith.constant 0 : i32
    return %c0_i32, %c0_i32_0 : i32, i32
  }
  func.func @transform_3(%arg0: i32, %arg1: i32) -> (i32, i32) {
    %c0_i32 = arith.constant 0 : i32
    %c0_i32_0 = arith.constant 0 : i32
    %c0_i32_1 = arith.constant 0 : i32
    return %c0_i32, %c0_i32_0 : i32, i32
  }
  func.func @transform_4(%arg0: i32, %arg1: i32) -> (i32, i32, i32) {
    %c0_i32 = arith.constant 0 : i32
    %c0_i32_0 = arith.constant 0 : i32
    return %arg0, %c0_i32, %arg1 : i32, i32, i32
  }
}

</mosaic_0001>

<llo_original>
// kernel: tpu_custom_call.1
$region0: #{tpu_custom_call.1}
  #allocation0 [shape = 'u32[]', space=smem, size = 0x4, offset = 0x4, fixed_abs, tag = 'smem constant byte address 0x4 - core index']
  #allocation1 [shape = 'u32[144,128]{1,0:T(1,128)}', space=vmem, size = 0x12000, scoped, tag = 'internal scratch']
  %s0 = inlined_call_operand.vmem [shape: f32[2,4,256], index: 0, kind: input, shape index: {}]
  %s1 = inlined_call_operand.vmem [shape: f32[32,8], index: 1, kind: input, shape index: {}]
  %s2 = inlined_call_operand.vmem [shape: f32[8,4], index: 2, kind: input, shape index: {}]
  %s3 = inlined_call_operand.vmem [shape: f32[8,1], index: 3, kind: input, shape index: {}]
  %s4 = inlined_call_operand.hbm [shape: f32[2,8,64], index: 4, kind: output, shape index: {}]
  %s5 = sld [smem:[#allocation0]]
  $region49: #{tpu_custom_call.1} parent=0
    _
  %s7 = ssub.s32 1, %s5
  %s8 = scalar_select 0, %s7, %s5
  $region1: #{tpu_custom_call.1} parent=0
    #allocation2 [shape = 'u8[8192]{0}', space=vmem, size = 0x2000, scoped, tag = 'output window, operand 0']
    #allocation3 [shape = 's32[2]{0}', space=sflag, size = 0x8, scoped, tag = 'scoped memory for tpu_custom_call.1']
    %9 = vsyncpa [#allocation3], 0
    %s10 = scalar_lea.sflag [#allocation3], 1
    %11 = vsyncpa %s10, 0
    loop: start=0, step=1, limit=4
    $region2: #{tpu_custom_call.1} parent=1 // loop_pre_header
      _
    $region3: #{tpu_custom_call.1} parent=1 // loop_header
      %s13 = sphi 0, %s17
      %p14 = scmp.ge.s32.totalorder %s13, 4
      %s20 = sphi 0, %s32
      %s21 = sphi 0, %s28
      %s22 = sphi 0, %s20
      %s23 = sphi 0, %s21
      %s24 = sphi 0, %s22
      %s25 = sphi 0, %s23
      %s37 = sphi 0, %s39
      %s40 = sphi 0, %s37
      %s41 = sphi 0, %s40
      %s57 = sphi 0, %s41
      %s61 = sphi 0, %s61
      %s63 = sphi 0, %s61
      %s64 = sphi 0, %s63
      %s78 = sphi 0, %s64
      %s82 = sphi 0, %s82
      %s84 = sphi 0, %s82
      %s85 = sphi 0, %s84
      %s99 = sphi 0, %s85
      %s103 = sphi 0, %s103
      %s105 = sphi 0, %s103
      %s106 = sphi 0, %s105
      %s120 = sphi 0, %s106
      %s128 = sphi 0, %s130
      %s131 = sphi 0, %s128
      %s132 = sphi 0, %s131
      %s148 = sphi 0, %s132
    $region4: #{tpu_custom_call.1} parent=1 // loop_header_branch
      %16 = sbr.rel (%p14) target = $region8
    $region5: #{tpu_custom_call.1} parent=1 // loop_body
      %s18 = ssub.s32 %s13, 1
      %s19 = ssub.s32 %s13, 2
      %s26 = sadd.s32 1, %s21
      %p27 = scmp.ge.s32.totalorder %s26, 1
      %s28 = scalar_select %p27, 0, %s26
      %s29 = sadd.s32 1, %s20
      %s30 = scalar_select %p27, %s29, %s20
      %p31 = scmp.ge.s32.totalorder %s30, 2
      %s32 = scalar_select %p31, 0, %s30
      %s33 = ssub.s32 %s20, %s32
      %s34 = ssub.s32 %s21, %s28
      %s35 = sor.u32 %s33, %s34
      %p36 = scmp.eq.s32.totalorder %s35, 0
      %s38 = sadd.s32 %s37, 1
      %s39 = scalar_select %p36, %s37, %s38
      %p42 = pneg %p36
      %p43 = scmp.eq.s32.totalorder %s13, 1
      %p44 = por %p42, %p43
      %p45 = scmp.ne.s32.totalorder %s37, %s40
      %p46 = scmp.eq.s32.totalorder %s13, 0
      %p47 = por %p45, %p46
      %p48 = scmp.ne.s32.totalorder %s37, %s40
      %p49 = scmp.eq.s32.totalorder %s18, 1
      %p50 = por %p48, %p49
      %p51 = scmp.ne.s32.totalorder %s40, %s41
      %p52 = scmp.eq.s32.totalorder %s18, 0
      %p53 = por %p51, %p52
      %p54 = scmp.ne.s32.totalorder %s40, %s41
      %p55 = scmp.eq.s32.totalorder %s19, 1
      %p56 = por %p54, %p55
      %p58 = scmp.ne.s32.totalorder %s41, %s57
      %p59 = scmp.eq.s32.totalorder %s19, 0
      %p60 = por %p58, %p59
      %s62 = sadd.s32 %s61, 1
      %p65 = scmp.eq.s32.totalorder %s13, 1
      %p66 = scmp.ne.s32.totalorder %s61, %s63
      %p67 = scmp.eq.s32.totalorder %s13, 0
      %p68 = por %p66, %p67
      %p69 = scmp.ne.s32.totalorder %s61, %s63
      %p70 = scmp.eq.s32.totalorder %s18, 1
      %p71 = por %p69, %p70
      %p72 = scmp.ne.s32.totalorder %s63, %s64
      %p73 = scmp.eq.s32.totalorder %s18, 0
      %p74 = por %p72, %p73
      %p75 = scmp.ne.s32.totalorder %s63, %s64
      %p76 = scmp.eq.s32.totalorder %s19, 1
      %p77 = por %p75, %p76
      %p79 = scmp.ne.s32.totalorder %s64, %s78
      %p80 = scmp.eq.s32.totalorder %s19, 0
      %p81 = por %p79, %p80
      %s83 = sadd.s32 %s82, 1
      %p86 = scmp.eq.s32.totalorder %s13, 1
      %p87 = scmp.ne.s32.totalorder %s82, %s84
      %p88 = scmp.eq.s32.totalorder %s13, 0
      %p89 = por %p87, %p88
      %p90 = scmp.ne.s32.totalorder %s82, %s84
      %p91 = scmp.eq.s32.totalorder %s18, 1
      %p92 = por %p90, %p91
      %p93 = scmp.ne.s32.totalorder %s84, %s85
      %p94 = scmp.eq.s32.totalorder %s18, 0
      %p95 = por %p93, %p94
      %p96 = scmp.ne.s32.totalorder %s84, %s85
      %p97 = scmp.eq.s32.totalorder %s19, 1
      %p98 = por %p96, %p97
      %p100 = scmp.ne.s32.totalorder %s85, %s99
      %p101 = scmp.eq.s32.totalorder %s19, 0
      %p102 = por %p100, %p101
      %s104 = sadd.s32 %s103, 1
      %p107 = scmp.eq.s32.totalorder %s13, 1
      %p108 = scmp.ne.s32.totalorder %s103, %s105
      %p109 = scmp.eq.s32.totalorder %s13, 0
      %p110 = por %p108, %p109
      %p111 = scmp.ne.s32.totalorder %s103, %s105
      %p112 = scmp.eq.s32.totalorder %s18, 1
      %p113 = por %p111, %p112
      %p114 = scmp.ne.s32.totalorder %s105, %s106
      %p115 = scmp.eq.s32.totalorder %s18, 0
      %p116 = por %p114, %p115
      %p117 = scmp.ne.s32.totalorder %s105, %s106
      %p118 = scmp.eq.s32.totalorder %s19, 1
      %p119 = por %p117, %p118
      %p121 = scmp.ne.s32.totalorder %s106, %s120
      %p122 = scmp.eq.s32.totalorder %s19, 0
      %p123 = por %p121, %p122
      %s124 = ssub.s32 %s20, %s32
      %s125 = ssub.s32 %s21, %s28
      %s126 = sor.u32 %s124, %s125
      %p127 = scmp.eq.s32.totalorder %s126, 0
      %s129 = sadd.s32 %s128, 1
      %s130 = scalar_select %p127, %s128, %s129
      %p133 = pneg %p127
      %p134 = scmp.eq.s32.totalorder %s13, 1
      %p135 = por %p133, %p134
      %p136 = scmp.ne.s32.totalorder %s128, %s131
      %p137 = scmp.eq.s32.totalorder %s13, 0
      %p138 = por %p136, %p137
      %p139 = scmp.ne.s32.totalorder %s128, %s131
      %p140 = scmp.eq.s32.totalorder %s18, 1
      %p141 = por %p139, %p140
      %p142 = scmp.ne.s32.totalorder %s131, %s132
      %p143 = scmp.eq.s32.totalorder %s18, 0
      %p144 = por %p142, %p143
      %p145 = scmp.ne.s32.totalorder %s131, %s132
      %p146 = scmp.eq.s32.totalorder %s19, 1
      %p147 = por %p145, %p146
      %p149 = scmp.ne.s32.totalorder %s132, %s148
      %p150 = scmp.eq.s32.totalorder %s19, 0
      %p151 = por %p149, %p150
      %p152 = scmp.le.s32.totalorder 1, %s13
      %p153 = scmp.lt.s32.totalorder %s13, 3
      %p154 = pnand %p152, %p153
      %p155 = pneg %p154
      // Predicated region
      $region9: #{tpu_custom_call.1} parent=5 // pred_check
        _
      $region10: #{tpu_custom_call.1} parent=5 // pred_check_branch
        %157 = sbr.rel (%p154) target = $region12
      $region11: #{tpu_custom_call.1} parent=5 // pred_region
        %s158 = ssub.s32 %s13, 1
        // Predicated region
        $region13: #{tpu_custom_call.1} parent=11 // pred_check
          %p159 = pneg %p74
        $region14: #{tpu_custom_call.1} parent=11 // pred_check_branch
          %161 = sbr.rel (%p159) target = $region16
        $region15: #{tpu_custom_call.1} parent=11 // pred_region
          _
        $region16: #{tpu_custom_call.1} parent=11 // pred_fallthru
          _
        // Predicated region
        $region17: #{tpu_custom_call.1} parent=11 // pred_check
          %p162 = pneg %p95
        $region18: #{tpu_custom_call.1} parent=11 // pred_check_branch
          %164 = sbr.rel (%p162) target = $region20
        $region19: #{tpu_custom_call.1} parent=11 // pred_region
          _
        $region20: #{tpu_custom_call.1} parent=11 // pred_fallthru
          _
        // Predicated region
        $region21: #{tpu_custom_call.1} parent=11 // pred_check
          %p165 = pneg %p116
        $region22: #{tpu_custom_call.1} parent=11 // pred_check_branch
          %167 = sbr.rel (%p165) target = $region24
        $region23: #{tpu_custom_call.1} parent=11 // pred_region
          _
        $region24: #{tpu_custom_call.1} parent=11 // pred_fallthru
          _
      $region12: #{tpu_custom_call.1} parent=5 // pred_fallthru
        _
      %p168 = scmp.lt.s32.totalorder %s13, 2
      // Predicated region
      $region25: #{tpu_custom_call.1} parent=5 // pred_check
        %p169 = pneg %p168
      $region26: #{tpu_custom_call.1} parent=5 // pred_check_branch
        %171 = sbr.rel (%p169) target = $region28
      $region27: #{tpu_custom_call.1} parent=5 // pred_region
        // Predicated region
        $region29: #{tpu_custom_call.1} parent=27 // pred_check
          %p172 = pneg %p47
        $region30: #{tpu_custom_call.1} parent=27 // pred_check_branch
          %174 = sbr.rel (%p172) target = $region32
        $region31: #{tpu_custom_call.1} parent=27 // pred_region
          %s175 = smul.u32 2, %s21
          %p176 = scmp.lt.s32.totalorder %s20, 1
          %s177 = scalar_select %p176, %s20, 1
          %p178 = scmp.lt.s32.totalorder %s175, 1
          %s179 = scalar_select %p178, %s175, 1
          %s180 = smul.addr %s177, 2
          %s181 = sadd.s32 %s179, %s180
          %s182 = smul.addr %s181, 4
          %s183 = scalar_lea.vmem %s0, %s182
          %s184 = smul.u32 2, %s21
        $region32: #{tpu_custom_call.1} parent=27 // pred_fallthru
          _
      $region28: #{tpu_custom_call.1} parent=5 // pred_fallthru
        _
      %p185 = scmp.le.s32.totalorder 1, %s13
      %p186 = scmp.lt.s32.totalorder %s13, 3
      %p187 = pnand %p185, %p186
      %p188 = pneg %p187
      // Predicated region
      $region33: #{tpu_custom_call.1} parent=5 // pred_check
        _
      $region34: #{tpu_custom_call.1} parent=5 // pred_check_branch
        %190 = sbr.rel (%p187) target = $region36
      $region35: #{tpu_custom_call.1} parent=5 // pred_region
        %s191 = ssub.s32 %s13, 1
        %s192 = smul.u32 2, %s23
        %p193 = scmp.lt.s32.totalorder %s22, 1
        %s194 = scalar_select %p193, %s22, 1
        %p195 = scmp.lt.s32.totalorder %s192, 1
        %s196 = scalar_select %p195, %s192, 1
        %s197 = smul.addr %s194, 2
        %s198 = sadd.s32 %s196, %s197
        %s199 = smul.addr %s198, 4
        %s200 = scalar_lea.vmem %s0, %s199
        %p201 = pneg %p53
        %p202 = pneg %p50
        %p203 = pneg %p74
        %p204 = pneg %p71
        %p205 = pneg %p95
        %p206 = pneg %p92
        %p207 = pneg %p116
        %p208 = pneg %p113
        %p209 = pneg %p144
        %p210 = pneg %p141
        %s211 = sand.u32 %s131, 1
        %s212 = scalar_lea.sflag [#allocation3], %s211
        %s213 = sand.u32 %s131, 1
        %s214 = smul.addr %s213, 8
        %s215 = scalar_lea.vmem [#allocation2], %s214
        %s216 = smul.u32 2, %s23
        %p217 = scmp.lt.s32.totalorder %s22, 1
        %s218 = scalar_select %p217, %s22, 1
        %p219 = scmp.lt.s32.totalorder %s216, 1
        %s220 = scalar_select %p219, %s216, 1
        %s221 = smul.addr %s218, 2
        %s222 = sadd.s32 %s220, %s221
        %s223 = smul.addr %s222, 4
        %s224 = scalar_lea.vmem %s0, %s223
        %s225 = smul.u32 2, %s23
        %v226 = vld [vmem:[%s224] sm:$0xff]
        %v227 = vld [vmem:[%s1] sm:$0xff]
        %v228 = vld [vmem:[%s1 + $0x8] sm:$0xff]
        %v229 = vld [vmem:[%s1 + $0x10] sm:$0xff]
        %v230 = vld [vmem:[%s1 + $0x18] sm:$0xff]
        %vm231 = vcmask 261120
        %v233 = vsel %vm231, %v226, 0
        %235 = vmatprep.subr.mxu0 0.0
        %236 = vmatpush1.msra.mxu0 %v227
        %237 = vmatprep.subr.mxu0 0.0
        %238 = vmatpush1.msra.mxu0 %v228
        %239 = vmatprep.subr.mxu0 0.0
        %240 = vmatpush1.msra.mxu0 %v229
        %241 = vmatprep.subr.mxu0 0.0
        %242 = vmatpush1.msra.mxu0 %v230
        %243 = vmatprep.subr.mxu0 0.0
        %244 = vmatpush1.msra.mxu0 0.0
        %245 = vmatprep.subr.mxu0 0.0
        %246 = vmatpush1.msra.mxu0 0.0
        %247 = vmatprep.subr.mxu0 0.0
        %248 = vmatpush1.msra.mxu0 0.0
        %249 = vmatprep.subr.mxu0 0.0
        %250 = vmatpush1.msra.mxu0 0.0
        %251 = vmatprep.subr.mxu0 0.0
        %252 = vmatpush1.msra.mxu0 0.0
        %253 = vmatprep.subr.mxu0 0.0
        %254 = vmatpush1.msra.mxu0 0.0
        %255 = vmatprep.subr.mxu0 0.0
        %256 = vmatpush1.msra.mxu0 0.0
        %257 = vmatprep.subr.mxu0 0.0
        %258 = vmatpush1.msra.mxu0 0.0
        %259 = vmatprep.subr.mxu0 0.0
        %260 = vmatpush1.msra.mxu0 0.0
        %261 = vmatprep.subr.mxu0 0.0
        %262 = vmatpush1.msra.mxu0 0.0
        %263 = vmatprep.subr.mxu0 0.0
        %264 = vmatpush1.msra.mxu0 0.0
        %265 = vmatprep.subr.mxu0 0.0
        %266 = vmatpush1.msra.mxu0 0.0
        %267 = vmatprep.subr.mxu0 0.0
        %268 = vmatpush1.msra.mxu0 0.0
        %269 = vmatprep.subr.mxu0 0.0
        %270 = vmatpush1.msra.mxu0 0.0
        %271 = vmatprep.subr.mxu0 0.0
        %272 = vmatpush1.msra.mxu0 0.0
        %273 = vmatprep.subr.mxu0 0.0
        %274 = vmatpush1.msra.mxu0 0.0
        %275 = vmatprep.subr.mxu0 0.0
        %276 = vmatpush1.msra.mxu0 0.0
        %277 = vmatprep.subr.mxu0 0.0
        %278 = vmatpush1.msra.mxu0 0.0
        %279 = vmatprep.subr.mxu0 0.0
        %280 = vmatpush1.msra.mxu0 0.0
        %281 = vmatprep.subr.mxu0 0.0
        %282 = vmatpush1.msra.mxu0 0.0
        %283 = vmatprep.subr.mxu0 0.0
        %284 = vmatpush1.msra.mxu0 0.0
        %285 = vmatprep.subr.mxu0 0.0
        %286 = vmatpush1.msra.mxu0 0.0
        %287 = vmatprep.subr.mxu0 0.0
        %288 = vmatpush1.msra.mxu0 0.0
        %289 = vmatprep.subr.mxu0 0.0
        %290 = vmatpush1.msra.mxu0 0.0
        %291 = vmatprep.subr.mxu0 0.0
        %292 = vmatpush1.msra.mxu0 0.0
        %293 = vmatprep.subr.mxu0 0.0
        %294 = vmatpush1.msra.mxu0 0.0
        %295 = vmatprep.subr.mxu0 0.0
        %296 = vmatpush1.msra.mxu0 0.0
        %297 = vmatprep.subr.mxu0 0.0
        %298 = vmatpush1.msra.mxu0 0.0
        %299 = vmatprep.mubr.f32.mxu0 0.0
        %300 = vmatmul.mubr.f32.gmra.mrb[0].mxu0 %v233
        %v301 = vpop.f32.mrb[0].mxu0
        %v302 = vadd.f32 0.0, %v301
        %v303 = vpop.f32.mrb[0].mxu0
        %304 = vdwg.mxu0
        %305 = vrot.lane.b32.xlu0 %v226, 96
        %v306 = vpop.permute.xlu0 %305
        %v307 = vsel %vm231, %v306, 0
        %309 = vmatprep.subr.mxu0 0.0
        %310 = vmatpush1.msra.mxu0 %v227
        %311 = vmatprep.subr.mxu0 0.0
        %312 = vmatpush1.msra.mxu0 %v228
        %313 = vmatprep.subr.mxu0 0.0
        %314 = vmatpush1.msra.mxu0 %v229
        %315 = vmatprep.subr.mxu0 0.0
        %316 = vmatpush1.msra.mxu0 %v230
        %317 = vmatprep.subr.mxu0 0.0
        %318 = vmatpush1.msra.mxu0 0.0
        %319 = vmatprep.subr.mxu0 0.0
        %320 = vmatpush1.msra.mxu0 0.0
        %321 = vmatprep.subr.mxu0 0.0
        %322 = vmatpush1.msra.mxu0 0.0
        %323 = vmatprep.subr.mxu0 0.0
        %324 = vmatpush1.msra.mxu0 0.0
        %325 = vmatprep.subr.mxu0 0.0
        %326 = vmatpush1.msra.mxu0 0.0
        %327 = vmatprep.subr.mxu0 0.0
        %328 = vmatpush1.msra.mxu0 0.0
        %329 = vmatprep.subr.mxu0 0.0
        %330 = vmatpush1.msra.mxu0 0.0
        %331 = vmatprep.subr.mxu0 0.0
        %332 = vmatpush1.msra.mxu0 0.0
        %333 = vmatprep.subr.mxu0 0.0
        %334 = vmatpush1.msra.mxu0 0.0
        %335 = vmatprep.subr.mxu0 0.0
        %336 = vmatpush1.msra.mxu0 0.0
        %337 = vmatprep.subr.mxu0 0.0
        %338 = vmatpush1.msra.mxu0 0.0
        %339 = vmatprep.subr.mxu0 0.0
        %340 = vmatpush1.msra.mxu0 0.0
        %341 = vmatprep.subr.mxu0 0.0
        %342 = vmatpush1.msra.mxu0 0.0
        %343 = vmatprep.subr.mxu0 0.0
        %344 = vmatpush1.msra.mxu0 0.0
        %345 = vmatprep.subr.mxu0 0.0
        %346 = vmatpush1.msra.mxu0 0.0
        %347 = vmatprep.subr.mxu0 0.0
        %348 = vmatpush1.msra.mxu0 0.0
        %349 = vmatprep.subr.mxu0 0.0
        %350 = vmatpush1.msra.mxu0 0.0
        %351 = vmatprep.subr.mxu0 0.0
        %352 = vmatpush1.msra.mxu0 0.0
        %353 = vmatprep.subr.mxu0 0.0
        %354 = vmatpush1.msra.mxu0 0.0
        %355 = vmatprep.subr.mxu0 0.0
        %356 = vmatpush1.msra.mxu0 0.0
        %357 = vmatprep.subr.mxu0 0.0
        %358 = vmatpush1.msra.mxu0 0.0
        %359 = vmatprep.subr.mxu0 0.0
        %360 = vmatpush1.msra.mxu0 0.0
        %361 = vmatprep.subr.mxu0 0.0
        %362 = vmatpush1.msra.mxu0 0.0
        %363 = vmatprep.subr.mxu0 0.0
        %364 = vmatpush1.msra.mxu0 0.0
        %365 = vmatprep.subr.mxu0 0.0
        %366 = vmatpush1.msra.mxu0 0.0
        %367 = vmatprep.subr.mxu0 0.0
        %368 = vmatpush1.msra.mxu0 0.0
        %369 = vmatprep.subr.mxu0 0.0
        %370 = vmatpush1.msra.mxu0 0.0
        %371 = vmatprep.subr.mxu0 0.0
        %372 = vmatpush1.msra.mxu0 0.0
        %373 = vmatprep.mubr.f32.mxu0 0.0
        %374 = vmatmul.mubr.f32.gmra.mrb[0].mxu0 %v307
        %v375 = vpop.f32.mrb[0].mxu0
        %v376 = vadd.f32 0.0, %v375
        %v377 = vpop.f32.mrb[0].mxu0
        %378 = vdwg.mxu0
        %379 = vrot.lane.b32.xlu0 %v226, 64
        %v380 = vpop.permute.xlu0 %379
        %v381 = vsel %vm231, %v380, 0
        %383 = vmatprep.subr.mxu0 0.0
        %384 = vmatpush1.msra.mxu0 %v227
        %385 = vmatprep.subr.mxu0 0.0
        %386 = vmatpush1.msra.mxu0 %v228
        %387 = vmatprep.subr.mxu0 0.0
        %388 = vmatpush1.msra.mxu0 %v229
        %389 = vmatprep.subr.mxu0 0.0
        %390 = vmatpush1.msra.mxu0 %v230
        %391 = vmatprep.subr.mxu0 0.0
        %392 = vmatpush1.msra.mxu0 0.0
        %393 = vmatprep.subr.mxu0 0.0
        %394 = vmatpush1.msra.mxu0 0.0
        %395 = vmatprep.subr.mxu0 0.0
        %396 = vmatpush1.msra.mxu0 0.0
        %397 = vmatprep.subr.mxu0 0.0
        %398 = vmatpush1.msra.mxu0 0.0
        %399 = vmatprep.subr.mxu0 0.0
        %400 = vmatpush1.msra.mxu0 0.0
        %401 = vmatprep.subr.mxu0 0.0
        %402 = vmatpush1.msra.mxu0 0.0
        %403 = vmatprep.subr.mxu0 0.0
        %404 = vmatpush1.msra.mxu0 0.0
        %405 = vmatprep.subr.mxu0 0.0
        %406 = vmatpush1.msra.mxu0 0.0
        %407 = vmatprep.subr.mxu0 0.0
        %408 = vmatpush1.msra.mxu0 0.0
        %409 = vmatprep.subr.mxu0 0.0
        %410 = vmatpush1.msra.mxu0 0.0
        %411 = vmatprep.subr.mxu0 0.0
        %412 = vmatpush1.msra.mxu0 0.0
        %413 = vmatprep.subr.mxu0 0.0
        %414 = vmatpush1.msra.mxu0 0.0
        %415 = vmatprep.subr.mxu0 0.0
        %416 = vmatpush1.msra.mxu0 0.0
        %417 = vmatprep.subr.mxu0 0.0
        %418 = vmatpush1.msra.mxu0 0.0
        %419 = vmatprep.subr.mxu0 0.0
        %420 = vmatpush1.msra.mxu0 0.0
        %421 = vmatprep.subr.mxu0 0.0
        %422 = vmatpush1.msra.mxu0 0.0
        %423 = vmatprep.subr.mxu0 0.0
        %424 = vmatpush1.msra.mxu0 0.0
        %425 = vmatprep.subr.mxu0 0.0
        %426 = vmatpush1.msra.mxu0 0.0
        %427 = vmatprep.subr.mxu0 0.0
        %428 = vmatpush1.msra.mxu0 0.0
        %429 = vmatprep.subr.mxu0 0.0
        %430 = vmatpush1.msra.mxu0 0.0
        %431 = vmatprep.subr.mxu0 0.0
        %432 = vmatpush1.msra.mxu0 0.0
        %433 = vmatprep.subr.mxu0 0.0
        %434 = vmatpush1.msra.mxu0 0.0
        %435 = vmatprep.subr.mxu0 0.0
        %436 = vmatpush1.msra.mxu0 0.0
        %437 = vmatprep.subr.mxu0 0.0
        %438 = vmatpush1.msra.mxu0 0.0
        %439 = vmatprep.subr.mxu0 0.0
        %440 = vmatpush1.msra.mxu0 0.0
        %441 = vmatprep.subr.mxu0 0.0
        %442 = vmatpush1.msra.mxu0 0.0
        %443 = vmatprep.subr.mxu0 0.0
        %444 = vmatpush1.msra.mxu0 0.0
        %445 = vmatprep.subr.mxu0 0.0
        %446 = vmatpush1.msra.mxu0 0.0
        %447 = vmatprep.mubr.f32.mxu0 0.0
        %448 = vmatmul.mubr.f32.gmra.mrb[0].mxu0 %v381
        %v449 = vpop.f32.mrb[0].mxu0
        %v450 = vadd.f32 0.0, %v449
        %v451 = vpop.f32.mrb[0].mxu0
        %452 = vdwg.mxu0
        %453 = vrot.lane.b32.xlu0 %v226, 32
        %v454 = vpop.permute.xlu0 %453
        %v455 = vsel %vm231, %v454, 0
        %457 = vmatprep.subr.mxu0 0.0
        %458 = vmatpush1.msra.mxu0 %v227
        %459 = vmatprep.subr.mxu0 0.0
        %460 = vmatpush1.msra.mxu0 %v228
        %461 = vmatprep.subr.mxu0 0.0
        %462 = vmatpush1.msra.mxu0 %v229
        %463 = vmatprep.subr.mxu0 0.0
        %464 = vmatpush1.msra.mxu0 %v230
        %465 = vmatprep.subr.mxu0 0.0
        %466 = vmatpush1.msra.mxu0 0.0
        %467 = vmatprep.subr.mxu0 0.0
        %468 = vmatpush1.msra.mxu0 0.0
        %469 = vmatprep.subr.mxu0 0.0
        %470 = vmatpush1.msra.mxu0 0.0
        %471 = vmatprep.subr.mxu0 0.0
        %472 = vmatpush1.msra.mxu0 0.0
        %473 = vmatprep.subr.mxu0 0.0
        %474 = vmatpush1.msra.mxu0 0.0
        %475 = vmatprep.subr.mxu0 0.0
        %476 = vmatpush1.msra.mxu0 0.0
        %477 = vmatprep.subr.mxu0 0.0
        %478 = vmatpush1.msra.mxu0 0.0
        %479 = vmatprep.subr.mxu0 0.0
        %480 = vmatpush1.msra.mxu0 0.0
        %481 = vmatprep.subr.mxu0 0.0
        %482 = vmatpush1.msra.mxu0 0.0
        %483 = vmatprep.subr.mxu0 0.0
        %484 = vmatpush1.msra.mxu0 0.0
        %485 = vmatprep.subr.mxu0 0.0
        %486 = vmatpush1.msra.mxu0 0.0
        %487 = vmatprep.subr.mxu0 0.0
        %488 = vmatpush1.msra.mxu0 0.0
        %489 = vmatprep.subr.mxu0 0.0
        %490 = vmatpush1.msra.mxu0 0.0
        %491 = vmatprep.subr.mxu0 0.0
        %492 = vmatpush1.msra.mxu0 0.0
        %493 = vmatprep.subr.mxu0 0.0
        %494 = vmatpush1.msra.mxu0 0.0
        %495 = vmatprep.subr.mxu0 0.0
        %496 = vmatpush1.msra.mxu0 0.0
        %497 = vmatprep.subr.mxu0 0.0
        %498 = vmatpush1.msra.mxu0 0.0
        %499 = vmatprep.subr.mxu0 0.0
        %500 = vmatpush1.msra.mxu0 0.0
        %501 = vmatprep.subr.mxu0 0.0
        %502 = vmatpush1.msra.mxu0 0.0
        %503 = vmatprep.subr.mxu0 0.0
        %504 = vmatpush1.msra.mxu0 0.0
        %505 = vmatprep.subr.mxu0 0.0
        %506 = vmatpush1.msra.mxu0 0.0
        %507 = vmatprep.subr.mxu0 0.0
        %508 = vmatpush1.msra.mxu0 0.0
        %509 = vmatprep.subr.mxu0 0.0
        %510 = vmatpush1.msra.mxu0 0.0
        %511 = vmatprep.subr.mxu0 0.0
        %512 = vmatpush1.msra.mxu0 0.0
        %513 = vmatprep.subr.mxu0 0.0
        %514 = vmatpush1.msra.mxu0 0.0
        %515 = vmatprep.subr.mxu0 0.0
        %516 = vmatpush1.msra.mxu0 0.0
        %517 = vmatprep.subr.mxu0 0.0
        %518 = vmatpush1.msra.mxu0 0.0
        %519 = vmatprep.subr.mxu0 0.0
        %520 = vmatpush1.msra.mxu0 0.0
        %521 = vmatprep.mubr.f32.mxu0 0.0
        %522 = vmatmul.mubr.f32.gmra.mrb[0].mxu0 %v455
        %v523 = vpop.f32.mrb[0].mxu0
        %v524 = vadd.f32 0.0, %v523
        %v525 = vpop.f32.mrb[0].mxu0
        %526 = vdwg.mxu0
        %v527 = vcombine.high %v226, %v226
        %v528 = vsel %vm231, %v527, 0
        %530 = vmatprep.subr.mxu0 0.0
        %531 = vmatpush1.msra.mxu0 %v227
        %532 = vmatprep.subr.mxu0 0.0
        %533 = vmatpush1.msra.mxu0 %v228
        %534 = vmatprep.subr.mxu0 0.0
        %535 = vmatpush1.msra.mxu0 %v229
        %536 = vmatprep.subr.mxu0 0.0
        %537 = vmatpush1.msra.mxu0 %v230
        %538 = vmatprep.subr.mxu0 0.0
        %539 = vmatpush1.msra.mxu0 0.0
        %540 = vmatprep.subr.mxu0 0.0
        %541 = vmatpush1.msra.mxu0 0.0
        %542 = vmatprep.subr.mxu0 0.0
        %543 = vmatpush1.msra.mxu0 0.0
        %544 = vmatprep.subr.mxu0 0.0
        %545 = vmatpush1.msra.mxu0 0.0
        %546 = vmatprep.subr.mxu0 0.0
        %547 = vmatpush1.msra.mxu0 0.0
        %548 = vmatprep.subr.mxu0 0.0
        %549 = vmatpush1.msra.mxu0 0.0
        %550 = vmatprep.subr.mxu0 0.0
        %551 = vmatpush1.msra.mxu0 0.0
        %552 = vmatprep.subr.mxu0 0.0
        %553 = vmatpush1.msra.mxu0 0.0
        %554 = vmatprep.subr.mxu0 0.0
        %555 = vmatpush1.msra.mxu0 0.0
        %556 = vmatprep.subr.mxu0 0.0
        %557 = vmatpush1.msra.mxu0 0.0
        %558 = vmatprep.subr.mxu0 0.0
        %559 = vmatpush1.msra.mxu0 0.0
        %560 = vmatprep.subr.mxu0 0.0
        %561 = vmatpush1.msra.mxu0 0.0
        %562 = vmatprep.subr.mxu0 0.0
        %563 = vmatpush1.msra.mxu0 0.0
        %564 = vmatprep.subr.mxu0 0.0
        %565 = vmatpush1.msra.mxu0 0.0
        %566 = vmatprep.subr.mxu0 0.0
        %567 = vmatpush1.msra.mxu0 0.0
        %568 = vmatprep.subr.mxu0 0.0
        %569 = vmatpush1.msra.mxu0 0.0
        %570 = vmatprep.subr.mxu0 0.0
        %571 = vmatpush1.msra.mxu0 0.0
        %572 = vmatprep.subr.mxu0 0.0
        %573 = vmatpush1.msra.mxu0 0.0
        %574 = vmatprep.subr.mxu0 0.0
        %575 = vmatpush1.msra.mxu0 0.0
        %576 = vmatprep.subr.mxu0 0.0
        %577 = vmatpush1.msra.mxu0 0.0
        %578 = vmatprep.subr.mxu0 0.0
        %579 = vmatpush1.msra.mxu0 0.0
        %580 = vmatprep.subr.mxu0 0.0
        %581 = vmatpush1.msra.mxu0 0.0
        %582 = vmatprep.subr.mxu0 0.0
        %583 = vmatpush1.msra.mxu0 0.0
        %584 = vmatprep.subr.mxu0 0.0
        %585 = vmatpush1.msra.mxu0 0.0
        %586 = vmatprep.subr.mxu0 0.0
        %587 = vmatpush1.msra.mxu0 0.0
        %588 = vmatprep.subr.mxu0 0.0
        %589 = vmatpush1.msra.mxu0 0.0
        %590 = vmatprep.subr.mxu0 0.0
        %591 = vmatpush1.msra.mxu0 0.0
        %592 = vmatprep.subr.mxu0 0.0
        %593 = vmatpush1.msra.mxu0 0.0
        %594 = vmatprep.mubr.f32.mxu0 0.0
        %595 = vmatmul.mubr.f32.gmra.mrb[0].mxu0 %v528
        %v596 = vpop.f32.mrb[0].mxu0
        %v597 = vadd.f32 0.0, %v596
        %v598 = vpop.f32.mrb[0].mxu0
        %599 = vdwg.mxu0
        %600 = vrot.lane.b32.xlu0 %v527, 96
        %v601 = vpop.permute.xlu0 %600
        %v602 = vsel %vm231, %v601, 0
        %604 = vmatprep.subr.mxu0 0.0
        %605 = vmatpush1.msra.mxu0 %v227
        %606 = vmatprep.subr.mxu0 0.0
        %607 = vmatpush1.msra.mxu0 %v228
        %608 = vmatprep.subr.mxu0 0.0
        %609 = vmatpush1.msra.mxu0 %v229
        %610 = vmatprep.subr.mxu0 0.0
        %611 = vmatpush1.msra.mxu0 %v230
        %612 = vmatprep.subr.mxu0 0.0
        %613 = vmatpush1.msra.mxu0 0.0
        %614 = vmatprep.subr.mxu0 0.0
        %615 = vmatpush1.msra.mxu0 0.0
        %616 = vmatprep.subr.mxu0 0.0
        %617 = vmatpush1.msra.mxu0 0.0
        %618 = vmatprep.subr.mxu0 0.0
        %619 = vmatpush1.msra.mxu0 0.0
        %620 = vmatprep.subr.mxu0 0.0
        %621 = vmatpush1.msra.mxu0 0.0
        %622 = vmatprep.subr.mxu0 0.0
        %623 = vmatpush1.msra.mxu0 0.0
        %624 = vmatprep.subr.mxu0 0.0
        %625 = vmatpush1.msra.mxu0 0.0
        %626 = vmatprep.subr.mxu0 0.0
        %627 = vmatpush1.msra.mxu0 0.0
        %628 = vmatprep.subr.mxu0 0.0
        %629 = vmatpush1.msra.mxu0 0.0
        %630 = vmatprep.subr.mxu0 0.0
        %631 = vmatpush1.msra.mxu0 0.0
        %632 = vmatprep.subr.mxu0 0.0
        %633 = vmatpush1.msra.mxu0 0.0
        %634 = vmatprep.subr.mxu0 0.0
        %635 = vmatpush1.msra.mxu0 0.0
        %636 = vmatprep.subr.mxu0 0.0
        %637 = vmatpush1.msra.mxu0 0.0
        %638 = vmatprep.subr.mxu0 0.0
        %639 = vmatpush1.msra.mxu0 0.0
        %640 = vmatprep.subr.mxu0 0.0
        %641 = vmatpush1.msra.mxu0 0.0
        %642 = vmatprep.subr.mxu0 0.0
        %643 = vmatpush1.msra.mxu0 0.0
        %644 = vmatprep.subr.mxu0 0.0
        %645 = vmatpush1.msra.mxu0 0.0
        %646 = vmatprep.subr.mxu0 0.0
        %647 = vmatpush1.msra.mxu0 0.0
        %648 = vmatprep.subr.mxu0 0.0
        %649 = vmatpush1.msra.mxu0 0.0
        %650 = vmatprep.subr.mxu0 0.0
        %651 = vmatpush1.msra.mxu0 0.0
        %652 = vmatprep.subr.mxu0 0.0
        %653 = vmatpush1.msra.mxu0 0.0
        %654 = vmatprep.subr.mxu0 0.0
        %655 = vmatpush1.msra.mxu0 0.0
        %656 = vmatprep.subr.mxu0 0.0
        %657 = vmatpush1.msra.mxu0 0.0
        %658 = vmatprep.subr.mxu0 0.0
        %659 = vmatpush1.msra.mxu0 0.0
        %660 = vmatprep.subr.mxu0 0.0
        %661 = vmatpush1.msra.mxu0 0.0
        %662 = vmatprep.subr.mxu0 0.0
        %663 = vmatpush1.msra.mxu0 0.0
        %664 = vmatprep.subr.mxu0 0.0
        %665 = vmatpush1.msra.mxu0 0.0
        %666 = vmatprep.subr.mxu0 0.0
        %667 = vmatpush1.msra.mxu0 0.0
        %668 = vmatprep.mubr.f32.mxu0 0.0
        %669 = vmatmul.mubr.f32.gmra.mrb[0].mxu0 %v602
        %v670 = vpop.f32.mrb[0].mxu0
        %v671 = vadd.f32 0.0, %v670
        %v672 = vpop.f32.mrb[0].mxu0
        %673 = vdwg.mxu0
        %674 = vrot.lane.b32.xlu0 %v527, 64
        %v675 = vpop.permute.xlu0 %674
        %v676 = vsel %vm231, %v675, 0
        %678 = vmatprep.subr.mxu0 0.0
        %679 = vmatpush1.msra.mxu0 %v227
        %680 = vmatprep.subr.mxu0 0.0
        %681 = vmatpush1.msra.mxu0 %v228
        %682 = vmatprep.subr.mxu0 0.0
        %683 = vmatpush1.msra.mxu0 %v229
        %684 = vmatprep.subr.mxu0 0.0
        %685 = vmatpush1.msra.mxu0 %v230
        %686 = vmatprep.subr.mxu0 0.0
        %687 = vmatpush1.msra.mxu0 0.0
        %688 = vmatprep.subr.mxu0 0.0
        %689 = vmatpush1.msra.mxu0 0.0
        %690 = vmatprep.subr.mxu0 0.0
        %691 = vmatpush1.msra.mxu0 0.0
        %692 = vmatprep.subr.mxu0 0.0
        %693 = vmatpush1.msra.mxu0 0.0
        %694 = vmatprep.subr.mxu0 0.0
        %695 = vmatpush1.msra.mxu0 0.0
        %696 = vmatprep.subr.mxu0 0.0
        %697 = vmatpush1.msra.mxu0 0.0
        %698 = vmatprep.subr.mxu0 0.0
        %699 = vmatpush1.msra.mxu0 0.0
        %700 = vmatprep.subr.mxu0 0.0
        %701 = vmatpush1.msra.mxu0 0.0
        %702 = vmatprep.subr.mxu0 0.0
        %703 = vmatpush1.msra.mxu0 0.0
        %704 = vmatprep.subr.mxu0 0.0
        %705 = vmatpush1.msra.mxu0 0.0
        %706 = vmatprep.subr.mxu0 0.0
        %707 = vmatpush1.msra.mxu0 0.0
        %708 = vmatprep.subr.mxu0 0.0
        %709 = vmatpush1.msra.mxu0 0.0
        %710 = vmatprep.subr.mxu0 0.0
        %711 = vmatpush1.msra.mxu0 0.0
        %712 = vmatprep.subr.mxu0 0.0
        %713 = vmatpush1.msra.mxu0 0.0
        %714 = vmatprep.subr.mxu0 0.0
        %715 = vmatpush1.msra.mxu0 0.0
        %716 = vmatprep.subr.mxu0 0.0
        %717 = vmatpush1.msra.mxu0 0.0
        %718 = vmatprep.subr.mxu0 0.0
        %719 = vmatpush1.msra.mxu0 0.0
        %720 = vmatprep.subr.mxu0 0.0
        %721 = vmatpush1.msra.mxu0 0.0
        %722 = vmatprep.subr.mxu0 0.0
        %723 = vmatpush1.msra.mxu0 0.0
        %724 = vmatprep.subr.mxu0 0.0
        %725 = vmatpush1.msra.mxu0 0.0
        %726 = vmatprep.subr.mxu0 0.0
        %727 = vmatpush1.msra.mxu0 0.0
        %728 = vmatprep.subr.mxu0 0.0
        %729 = vmatpush1.msra.mxu0 0.0
        %730 = vmatprep.subr.mxu0 0.0
        %731 = vmatpush1.msra.mxu0 0.0
        %732 = vmatprep.subr.mxu0 0.0
        %733 = vmatpush1.msra.mxu0 0.0
        %734 = vmatprep.subr.mxu0 0.0
        %735 = vmatpush1.msra.mxu0 0.0
        %736 = vmatprep.subr.mxu0 0.0
        %737 = vmatpush1.msra.mxu0 0.0
        %738 = vmatprep.subr.mxu0 0.0
        %739 = vmatpush1.msra.mxu0 0.0
        %740 = vmatprep.subr.mxu0 0.0
        %741 = vmatpush1.msra.mxu0 0.0
        %742 = vmatprep.mubr.f32.mxu0 0.0
        %743 = vmatmul.mubr.f32.gmra.mrb[0].mxu0 %v676
        %v744 = vpop.f32.mrb[0].mxu0
        %v745 = vadd.f32 0.0, %v744
        %v746 = vpop.f32.mrb[0].mxu0
        %747 = vdwg.mxu0
        %748 = vrot.lane.b32.xlu0 %v527, 32
        %v749 = vpop.permute.xlu0 %748
        %v750 = vsel %vm231, %v749, 0
        %752 = vmatprep.subr.mxu0 0.0
        %753 = vmatpush1.msra.mxu0 %v227
        %754 = vmatprep.subr.mxu0 0.0
        %755 = vmatpush1.msra.mxu0 %v228
        %756 = vmatprep.subr.mxu0 0.0
        %757 = vmatpush1.msra.mxu0 %v229
        %758 = vmatprep.subr.mxu0 0.0
        %759 = vmatpush1.msra.mxu0 %v230
        %760 = vmatprep.subr.mxu0 0.0
        %761 = vmatpush1.msra.mxu0 0.0
        %762 = vmatprep.subr.mxu0 0.0
        %763 = vmatpush1.msra.mxu0 0.0
        %764 = vmatprep.subr.mxu0 0.0
        %765 = vmatpush1.msra.mxu0 0.0
        %766 = vmatprep.subr.mxu0 0.0
        %767 = vmatpush1.msra.mxu0 0.0
        %768 = vmatprep.subr.mxu0 0.0
        %769 = vmatpush1.msra.mxu0 0.0
        %770 = vmatprep.subr.mxu0 0.0
        %771 = vmatpush1.msra.mxu0 0.0
        %772 = vmatprep.subr.mxu0 0.0
        %773 = vmatpush1.msra.mxu0 0.0
        %774 = vmatprep.subr.mxu0 0.0
        %775 = vmatpush1.msra.mxu0 0.0
        %776 = vmatprep.subr.mxu0 0.0
        %777 = vmatpush1.msra.mxu0 0.0
        %778 = vmatprep.subr.mxu0 0.0
        %779 = vmatpush1.msra.mxu0 0.0
        %780 = vmatprep.subr.mxu0 0.0
        %781 = vmatpush1.msra.mxu0 0.0
        %782 = vmatprep.subr.mxu0 0.0
        %783 = vmatpush1.msra.mxu0 0.0
        %784 = vmatprep.subr.mxu0 0.0
        %785 = vmatpush1.msra.mxu0 0.0
        %786 = vmatprep.subr.mxu0 0.0
        %787 = vmatpush1.msra.mxu0 0.0
        %788 = vmatprep.subr.mxu0 0.0
        %789 = vmatpush1.msra.mxu0 0.0
        %790 = vmatprep.subr.mxu0 0.0
        %791 = vmatpush1.msra.mxu0 0.0
        %792 = vmatprep.subr.mxu0 0.0
        %793 = vmatpush1.msra.mxu0 0.0
        %794 = vmatprep.subr.mxu0 0.0
        %795 = vmatpush1.msra.mxu0 0.0
        %796 = vmatprep.subr.mxu0 0.0
        %797 = vmatpush1.msra.mxu0 0.0
        %798 = vmatprep.subr.mxu0 0.0
        %799 = vmatpush1.msra.mxu0 0.0
        %800 = vmatprep.subr.mxu0 0.0
        %801 = vmatpush1.msra.mxu0 0.0
        %802 = vmatprep.subr.mxu0 0.0
        %803 = vmatpush1.msra.mxu0 0.0
        %804 = vmatprep.subr.mxu0 0.0
        %805 = vmatpush1.msra.mxu0 0.0
        %806 = vmatprep.subr.mxu0 0.0
        %807 = vmatpush1.msra.mxu0 0.0
        %808 = vmatprep.subr.mxu0 0.0
        %809 = vmatpush1.msra.mxu0 0.0
        %810 = vmatprep.subr.mxu0 0.0
        %811 = vmatpush1.msra.mxu0 0.0
        %812 = vmatprep.subr.mxu0 0.0
        %813 = vmatpush1.msra.mxu0 0.0
        %814 = vmatprep.subr.mxu0 0.0
        %815 = vmatpush1.msra.mxu0 0.0
        %816 = vmatprep.mubr.f32.mxu0 0.0
        %817 = vmatmul.mubr.f32.gmra.mrb[0].mxu0 %v750
        %v818 = vpop.f32.mrb[0].mxu0
        %v819 = vadd.f32 0.0, %v818
        %v820 = vpop.f32.mrb[0].mxu0
        %821 = vdwg.mxu0
        %823 = vrot.lane.b32.xlu0 %v376, 8
        %v824 = vpop.permute.xlu0 %823
        %827 = vrot.lane.b32.xlu0 %v450, 16
        %v828 = vpop.permute.xlu0 %827
        %831 = vrot.lane.b32.xlu0 %v524, 24
        %v832 = vpop.permute.xlu0 %831
        %835 = vrot.lane.b32.xlu0 %v597, 32
        %v836 = vpop.permute.xlu0 %835
        %839 = vrot.lane.b32.xlu0 %v671, 40
        %v840 = vpop.permute.xlu0 %839
        %843 = vrot.lane.b32.xlu0 %v745, 48
        %v844 = vpop.permute.xlu0 %843
        %847 = vrot.lane.b32.xlu0 %v819, 56
        %v848 = vpop.permute.xlu0 %847
        %vm850 = vcmask 64512
        %v851 = vsel %vm850, %v302, %v824
        %vm852 = vcmask 130048
        %v853 = vsel %vm852, %v851, %v828
        %vm854 = vcmask 195584
        %v855 = vsel %vm854, %v853, %v832
        %v856 = vsel %vm231, %v855, %v836
        %vm857 = vcmask 326656
        %v858 = vsel %vm857, %v856, %v840
        %vm859 = vcmask 392192
        %v860 = vsel %vm859, %v858, %v844
        %vm861 = vcmask 457728
        %v862 = vsel %vm861, %v860, %v848
        %v863 = vld [vmem:[%s2] sm:$0xff]
        %v864 = vld [vmem:[%s3] sm:$0xff]
        %866 = vset.pattern.permute.xlu0 0
        %867 = vperm.xlu0 %866, %v864
        %v868 = vpop.permute.xlu0 %867
        %vm870 = vcmask 31744
        %v872 = vsel %vm870, %v863, 0
        %vm874 = vcmask 1043456
        %v876 = vsel %vm874, %v862, 0
        %878 = vmatprep.subr.mxu0 0.0
        %879 = vmatpush1.msra.mxu0 %v876
        %880 = vmatprep.subr.mxu0 0.0
        %881 = vmatpush1.msra.mxu0 0.0
        %882 = vmatprep.subr.mxu0 0.0
        %883 = vmatpush1.msra.mxu0 0.0
        %884 = vmatprep.subr.mxu0 0.0
        %885 = vmatpush1.msra.mxu0 0.0
        %886 = vmatprep.subr.mxu0 0.0
        %887 = vmatpush1.msra.mxu0 0.0
        %888 = vmatprep.subr.mxu0 0.0
        %889 = vmatpush1.msra.mxu0 0.0
        %890 = vmatprep.subr.mxu0 0.0
        %891 = vmatpush1.msra.mxu0 0.0
        %892 = vmatprep.subr.mxu0 0.0
        %893 = vmatpush1.msra.mxu0 0.0
        %894 = vmatprep.subr.mxu0 0.0
        %895 = vmatpush1.msra.mxu0 0.0
        %896 = vmatprep.subr.mxu0 0.0
        %897 = vmatpush1.msra.mxu0 0.0
        %898 = vmatprep.subr.mxu0 0.0
        %899 = vmatpush1.msra.mxu0 0.0
        %900 = vmatprep.subr.mxu0 0.0
        %901 = vmatpush1.msra.mxu0 0.0
        %902 = vmatprep.subr.mxu0 0.0
        %903 = vmatpush1.msra.mxu0 0.0
        %904 = vmatprep.subr.mxu0 0.0
        %905 = vmatpush1.msra.mxu0 0.0
        %906 = vmatprep.subr.mxu0 0.0
        %907 = vmatpush1.msra.mxu0 0.0
        %908 = vmatprep.subr.mxu0 0.0
        %909 = vmatpush1.msra.mxu0 0.0
        %910 = vmatprep.subr.mxu0 0.0
        %911 = vmatpush1.msra.mxu0 0.0
        %912 = vmatprep.subr.mxu0 0.0
        %913 = vmatpush1.msra.mxu0 0.0
        %914 = vmatprep.subr.mxu0 0.0
        %915 = vmatpush1.msra.mxu0 0.0
        %916 = vmatprep.subr.mxu0 0.0
        %917 = vmatpush1.msra.mxu0 0.0
        %918 = vmatprep.subr.mxu0 0.0
        %919 = vmatpush1.msra.mxu0 0.0
        %920 = vmatprep.subr.mxu0 0.0
        %921 = vmatpush1.msra.mxu0 0.0
        %922 = vmatprep.subr.mxu0 0.0
        %923 = vmatpush1.msra.mxu0 0.0
        %924 = vmatprep.subr.mxu0 0.0
        %925 = vmatpush1.msra.mxu0 0.0
        %926 = vmatprep.subr.mxu0 0.0
        %927 = vmatpush1.msra.mxu0 0.0
        %928 = vmatprep.subr.mxu0 0.0
        %929 = vmatpush1.msra.mxu0 0.0
        %930 = vmatprep.subr.mxu0 0.0
        %931 = vmatpush1.msra.mxu0 0.0
        %932 = vmatprep.subr.mxu0 0.0
        %933 = vmatpush1.msra.mxu0 0.0
        %934 = vmatprep.subr.mxu0 0.0
        %935 = vmatpush1.msra.mxu0 0.0
        %936 = vmatprep.subr.mxu0 0.0
        %937 = vmatpush1.msra.mxu0 0.0
        %938 = vmatprep.subr.mxu0 0.0
        %939 = vmatpush1.msra.mxu0 0.0
        %940 = vmatprep.subr.mxu0 0.0
        %941 = vmatpush1.msra.mxu0 0.0
        %942 = vmatprep.mubr.f32.mxu0 0.0
        %943 = vmatmul.mubr.f32.gmra.mrb[0].mxu0 %v872
        %v944 = vpop.f32.mrb[0].mxu0
        %v945 = vadd.f32 %v868, %v944
        %v946 = vpop.f32.mrb[0].mxu0
        %947 = vdwg.mxu0
        %vm948 = vcmask 523264
        %949 = vst.msk [vmem:[%s215] sm:$0xff] %vm948, %v945
        %s950 = sand.u32 %s131, 1
        %s951 = scalar_lea.sflag [#allocation3], %s950
        %s952 = sand.u32 %s131, 1
        %s953 = smul.addr %s952, 8
        %s954 = scalar_lea.vmem [#allocation2], %s953
        // Predicated region
        $region37: #{tpu_custom_call.1} parent=35 // pred_check
          %p955 = pneg %p141
        $region38: #{tpu_custom_call.1} parent=35 // pred_check_branch
          %957 = sbr.rel (%p955) target = $region40
        $region39: #{tpu_custom_call.1} parent=35 // pred_region
          %s959 = ssub.s32 128, 128
          %960 = vsyncadd %s951, %s959
          %s961 = sadd.s32 %s23, %s22
          %s962 = smul.addr %s961, 128
          %s963 = scalar_lea.hbm %s4, %s962
          %s965 = sshll.u32 %s954, 4
          %s966 = int_to_ptr.vmem [resolvable:$true] %s965
          %968 = dma.vmem_to_hbm [thread:$0]  %s966, 128, %s963, %s951
        $region40: #{tpu_custom_call.1} parent=35 // pred_fallthru
          _
      $region36: #{tpu_custom_call.1} parent=5 // pred_fallthru
        _
      %p969 = scmp.le.s32.totalorder 2, %s13
      // Predicated region
      $region41: #{tpu_custom_call.1} parent=5 // pred_check
        %p970 = pneg %p969
      $region42: #{tpu_custom_call.1} parent=5 // pred_check_branch
        %972 = sbr.rel (%p970) target = $region44
      $region43: #{tpu_custom_call.1} parent=5 // pred_region
        %s973 = ssub.s32 %s13, 2
        // Predicated region
        $region45: #{tpu_custom_call.1} parent=43 // pred_check
          %p974 = pneg %p147
        $region46: #{tpu_custom_call.1} parent=43 // pred_check_branch
          %976 = sbr.rel (%p974) target = $region48
        $region47: #{tpu_custom_call.1} parent=43 // pred_region
          %s977 = sand.u32 %s132, 1
          %s978 = scalar_lea.sflag [#allocation3], %s977
          %s979 = sand.u32 %s132, 1
          %s980 = smul.addr %s979, 8
          %s981 = scalar_lea.vmem [#allocation2], %s980
          %982 = dma.done %s978, 128
        $region48: #{tpu_custom_call.1} parent=43 // pred_fallthru
          _
      $region44: #{tpu_custom_call.1} parent=5 // pred_fallthru
        _
    $region6: #{tpu_custom_call.1} parent=1 // loop_footer
      %s17 = sadd.s32 1, %s13
    $region7: #{tpu_custom_call.1} parent=1 // loop_footer_branch
      %12 = sbr.rel target = $region3
    $region8: #{tpu_custom_call.1} parent=1 // loop_exit
      _
    %983 = vsyncpa [#allocation3], 1
    %s984 = scalar_lea.sflag [#allocation3], 1
    %985 = vsyncpa %s984, 1

// kernel: tpu_custom_call.1
$region0: #{tpu_custom_call.1}
  #allocation0 [shape = 'u32[]', space=smem, size = 0x4, offset = 0x4, fixed_abs, tag = 'smem constant byte address 0x4 - core index']
  #allocation1 [shape = 'u32[144,128]{1,0:T(1,128)}', space=vmem, size = 0x12000, scoped, tag = 'internal scratch']
  %s0 = inlined_call_operand.vmem [shape: f32[2,4,256], index: 0, kind: input, shape index: {}]
  %s1 = inlined_call_operand.vmem [shape: f32[32,8], index: 1, kind: input, shape index: {}]
  %s2 = inlined_call_operand.vmem [shape: f32[8,4], index: 2, kind: input, shape index: {}]
  %s3 = inlined_call_operand.vmem [shape: f32[8,1], index: 3, kind: input, shape index: {}]
  %s4 = inlined_call_operand.hbm [shape: f32[2,8,64], index: 4, kind: output, shape index: {}]
  %s5 = sld [smem:[#allocation0]]
  $region49: #{tpu_custom_call.1} parent=0
    _
  %s7 = ssub.s32 1, %s5
  %s8 = scalar_select 0, %s7, %s5
  $region1: #{tpu_custom_call.1} parent=0
    #allocation2 [shape = 'u8[8192]{0}', space=vmem, size = 0x2000, scoped, tag = 'output window, operand 0']
    #allocation3 [shape = 's32[2]{0}', space=sflag, size = 0x8, scoped, tag = 'scoped memory for tpu_custom_call.1']
    %9 = vsyncpa [#allocation3], 0
    %s10 = scalar_lea.sflag [#allocation3], 1
    %11 = vsyncpa %s10, 0
    loop: start=0, step=1, limit=4
    $region2: #{tpu_custom_call.1} parent=1 // loop_pre_header
      _
    $region3: #{tpu_custom_call.1} parent=1 // loop_header
      %s13 = sphi 0, %s17
      %p14 = scmp.ge.s32.totalorder %s13, 4
      %s20 = sphi 0, %s32
      %s21 = sphi 0, %s28
      %s22 = sphi 0, %s20
      %s23 = sphi 0, %s21
      %s24 = sphi 0, %s22
      %s25 = sphi 0, %s23
      %s37 = sphi 0, %s39
      %s40 = sphi 0, %s37
      %s41 = sphi 0, %s40
      %s57 = sphi 0, %s41
      %s61 = sphi 0, %s61
      %s63 = sphi 0, %s61
      %s64 = sphi 0, %s63
      %s78 = sphi 0, %s64
      %s82 = sphi 0, %s82
      %s84 = sphi 0, %s82
      %s85 = sphi 0, %s84
      %s99 = sphi 0, %s85
      %s103 = sphi 0, %s103
      %s105 = sphi 0, %s103
      %s106 = sphi 0, %s105
      %s120 = sphi 0, %s106
      %s128 = sphi 0, %s130
      %s131 = sphi 0, %s128
      %s132 = sphi 0, %s131
      %s148 = sphi 0, %s132
    $region4: #{tpu_custom_call.1} parent=1 // loop_header_branch
      %16 = sbr.rel (%p14) target = $region8
    $region5: #{tpu_custom_call.1} parent=1 // loop_body
      %s18 = ssub.s32 %s13, 1
      %s19 = ssub.s32 %s13, 2
      %s26 = sadd.s32 1, %s21
      %p27 = scmp.ge.s32.totalorder %s26, 1
      %s28 = scalar_select %p27, 0, %s26
      %s29 = sadd.s32 1, %s20
      %s30 = scalar_select %p27, %s29, %s20
      %p31 = scmp.ge.s32.totalorder %s30, 2
      %s32 = scalar_select %p31, 0, %s30
      %s33 = ssub.s32 %s20, %s32
      %s34 = ssub.s32 %s21, %s28
      %s35 = sor.u32 %s33, %s34
      %p36 = scmp.eq.s32.totalorder %s35, 0
      %s38 = sadd.s32 %s37, 1
      %s39 = scalar_select %p36, %s37, %s38
      %p42 = pneg %p36
      %p43 = scmp.eq.s32.totalorder %s13, 1
      %p44 = por %p42, %p43
      %p45 = scmp.ne.s32.totalorder %s37, %s40
      %p46 = scmp.eq.s32.totalorder %s13, 0
      %p47 = por %p45, %p46
      %p48 = scmp.ne.s32.totalorder %s37, %s40
      %p49 = scmp.eq.s32.totalorder %s18, 1
      %p50 = por %p48, %p49
      %p51 = scmp.ne.s32.totalorder %s40, %s41
      %p52 = scmp.eq.s32.totalorder %s18, 0
      %p53 = por %p51, %p52
      %p54 = scmp.ne.s32.totalorder %s40, %s41
      %p55 = scmp.eq.s32.totalorder %s19, 1
      %p56 = por %p54, %p55
      %p58 = scmp.ne.s32.totalorder %s41, %s57
      %p59 = scmp.eq.s32.totalorder %s19, 0
      %p60 = por %p58, %p59
      %s62 = sadd.s32 %s61, 1
      %p65 = scmp.eq.s32.totalorder %s13, 1
      %p66 = scmp.ne.s32.totalorder %s61, %s63
      %p67 = scmp.eq.s32.totalorder %s13, 0
      %p68 = por %p66, %p67
      %p69 = scmp.ne.s32.totalorder %s61, %s63
      %p70 = scmp.eq.s32.totalorder %s18, 1
      %p71 = por %p69, %p70
      %p72 = scmp.ne.s32.totalorder %s63, %s64
      %p73 = scmp.eq.s32.totalorder %s18, 0
      %p74 = por %p72, %p73
      %p75 = scmp.ne.s32.totalorder %s63, %s64
      %p76 = scmp.eq.s32.totalorder %s19, 1
      %p77 = por %p75, %p76
      %p79 = scmp.ne.s32.totalorder %s64, %s78
      %p80 = scmp.eq.s32.totalorder %s19, 0
      %p81 = por %p79, %p80
      %s83 = sadd.s32 %s82, 1
      %p86 = scmp.eq.s32.totalorder %s13, 1
      %p87 = scmp.ne.s32.totalorder %s82, %s84
      %p88 = scmp.eq.s32.totalorder %s13, 0
      %p89 = por %p87, %p88
      %p90 = scmp.ne.s32.totalorder %s82, %s84
      %p91 = scmp.eq.s32.totalorder %s18, 1
      %p92 = por %p90, %p91
      %p93 = scmp.ne.s32.totalorder %s84, %s85
      %p94 = scmp.eq.s32.totalorder %s18, 0
      %p95 = por %p93, %p94
      %p96 = scmp.ne.s32.totalorder %s84, %s85
      %p97 = scmp.eq.s32.totalorder %s19, 1
      %p98 = por %p96, %p97
      %p100 = scmp.ne.s32.totalorder %s85, %s99
      %p101 = scmp.eq.s32.totalorder %s19, 0
      %p102 = por %p100, %p101
      %s104 = sadd.s32 %s103, 1
      %p107 = scmp.eq.s32.totalorder %s13, 1
      %p108 = scmp.ne.s32.totalorder %s103, %s105
      %p109 = scmp.eq.s32.totalorder %s13, 0
      %p110 = por %p108, %p109
      %p111 = scmp.ne.s32.totalorder %s103, %s105
      %p112 = scmp.eq.s32.totalorder %s18, 1
      %p113 = por %p111, %p112
      %p114 = scmp.ne.s32.totalorder %s105, %s106
      %p115 = scmp.eq.s32.totalorder %s18, 0
      %p116 = por %p114, %p115
      %p117 = scmp.ne.s32.totalorder %s105, %s106
      %p118 = scmp.eq.s32.totalorder %s19, 1
      %p119 = por %p117, %p118
      %p121 = scmp.ne.s32.totalorder %s106, %s120
      %p122 = scmp.eq.s32.totalorder %s19, 0
      %p123 = por %p121, %p122
      %s124 = ssub.s32 %s20, %s32
      %s125 = ssub.s32 %s21, %s28
      %s126 = sor.u32 %s124, %s125
      %p127 = scmp.eq.s32.totalorder %s126, 0
      %s129 = sadd.s32 %s128, 1
      %s130 = scalar_select %p127, %s128, %s129
      %p133 = pneg %p127
      %p134 = scmp.eq.s32.totalorder %s13, 1
      %p135 = por %p133, %p134
      %p136 = scmp.ne.s32.totalorder %s128, %s131
      %p137 = scmp.eq.s32.totalorder %s13, 0
      %p138 = por %p136, %p137
      %p139 = scmp.ne.s32.totalorder %s128, %s131
      %p140 = scmp.eq.s32.totalorder %s18, 1
      %p141 = por %p139, %p140
      %p142 = scmp.ne.s32.totalorder %s131, %s132
      %p143 = scmp.eq.s32.totalorder %s18, 0
      %p144 = por %p142, %p143
      %p145 = scmp.ne.s32.totalorder %s131, %s132
      %p146 = scmp.eq.s32.totalorder %s19, 1
      %p147 = por %p145, %p146
      %p149 = scmp.ne.s32.totalorder %s132, %s148
      %p150 = scmp.eq.s32.totalorder %s19, 0
      %p151 = por %p149, %p150
      %p152 = scmp.le.s32.totalorder 1, %s13
      %p153 = scmp.lt.s32.totalorder %s13, 3
      %p154 = pnand %p152, %p153
      %p155 = pneg %p154
      // Predicated region
      $region9: #{tpu_custom_call.1} parent=5 // pred_check
        _
      $region10: #{tpu_custom_call.1} parent=5 // pred_check_branch
        %157 = sbr.rel (%p154) target = $region12
      $region11: #{tpu_custom_call.1} parent=5 // pred_region
        %s158 = ssub.s32 %s13, 1
        // Predicated region
        $region13: #{tpu_custom_call.1} parent=11 // pred_check
          %p159 = pneg %p74
        $region14: #{tpu_custom_call.1} parent=11 // pred_check_branch
          %161 = sbr.rel (%p159) target = $region16
        $region15: #{tpu_custom_call.1} parent=11 // pred_region
          _
        $region16: #{tpu_custom_call.1} parent=11 // pred_fallthru
          _
        // Predicated region
        $region17: #{tpu_custom_call.1} parent=11 // pred_check
          %p162 = pneg %p95
        $region18: #{tpu_custom_call.1} parent=11 // pred_check_branch
          %164 = sbr.rel (%p162) target = $region20
        $region19: #{tpu_custom_call.1} parent=11 // pred_region
          _
        $region20: #{tpu_custom_call.1} parent=11 // pred_fallthru
          _
        // Predicated region
        $region21: #{tpu_custom_call.1} parent=11 // pred_check
          %p165 = pneg %p116
        $region22: #{tpu_custom_call.1} parent=11 // pred_check_branch
          %167 = sbr.rel (%p165) target = $region24
        $region23: #{tpu_custom_call.1} parent=11 // pred_region
          _
        $region24: #{tpu_custom_call.1} parent=11 // pred_fallthru
          _
      $region12: #{tpu_custom_call.1} parent=5 // pred_fallthru
        _
      %p168 = scmp.lt.s32.totalorder %s13, 2
      // Predicated region
      $region25: #{tpu_custom_call.1} parent=5 // pred_check
        %p169 = pneg %p168
      $region26: #{tpu_custom_call.1} parent=5 // pred_check_branch
        %171 = sbr.rel (%p169) target = $region28
      $region27: #{tpu_custom_call.1} parent=5 // pred_region
        // Predicated region
        $region29: #{tpu_custom_call.1} parent=27 // pred_check
          %p172 = pneg %p47
        $region30: #{tpu_custom_call.1} parent=27 // pred_check_branch
          %174 = sbr.rel (%p172) target = $region32
        $region31: #{tpu_custom_call.1} parent=27 // pred_region
          %s175 = smul.u32 2, %s21
          %p176 = scmp.lt.s32.totalorder %s20, 1
          %s177 = scalar_select %p176, %s20, 1
          %p178 = scmp.lt.s32.totalorder %s175, 1
          %s179 = scalar_select %p178, %s175, 1
          %s180 = smul.addr %s177, 2
          %s181 = sadd.s32 %s179, %s180
          %s182 = smul.addr %s181, 4
          %s183 = scalar_lea.vmem %s0, %s182
          %s184 = smul.u32 2, %s21
        $region32: #{tpu_custom_call.1} parent=27 // pred_fallthru
          _
      $region28: #{tpu_custom_call.1} parent=5 // pred_fallthru
        _
      %p185 = scmp.le.s32.totalorder 1, %s13
      %p186 = scmp.lt.s32.totalorder %s13, 3
      %p187 = pnand %p185, %p186
      %p188 = pneg %p187
      // Predicated region
      $region33: #{tpu_custom_call.1} parent=5 // pred_check
        _
      $region34: #{tpu_custom_call.1} parent=5 // pred_check_branch
        %190 = sbr.rel (%p187) target = $region36
      $region35: #{tpu_custom_call.1} parent=5 // pred_region
        %s191 = ssub.s32 %s13, 1
        %s192 = smul.u32 2, %s23
        %p193 = scmp.lt.s32.totalorder %s22, 1
        %s194 = scalar_select %p193, %s22, 1
        %p195 = scmp.lt.s32.totalorder %s192, 1
        %s196 = scalar_select %p195, %s192, 1
        %s197 = smul.addr %s194, 2
        %s198 = sadd.s32 %s196, %s197
        %s199 = smul.addr %s198, 4
        %s200 = scalar_lea.vmem %s0, %s199
        %p201 = pneg %p53
        %p202 = pneg %p50
        %p203 = pneg %p74
        %p204 = pneg %p71
        %p205 = pneg %p95
        %p206 = pneg %p92
        %p207 = pneg %p116
        %p208 = pneg %p113
        %p209 = pneg %p144
        %p210 = pneg %p141
        %s211 = sand.u32 %s131, 1
        %s212 = scalar_lea.sflag [#allocation3], %s211
        %s213 = sand.u32 %s131, 1
        %s214 = smul.addr %s213, 8
        %s215 = scalar_lea.vmem [#allocation2], %s214
        %s216 = smul.u32 2, %s23
        %p217 = scmp.lt.s32.totalorder %s22, 1
        %s218 = scalar_select %p217, %s22, 1
        %p219 = scmp.lt.s32.totalorder %s216, 1
        %s220 = scalar_select %p219, %s216, 1
        %s221 = smul.addr %s218, 2
        %s222 = sadd.s32 %s220, %s221
        %s223 = smul.addr %s222, 4
        %s224 = scalar_lea.vmem %s0, %s223
        %s225 = smul.u32 2, %s23
        %v226 = vld [vmem:[%s224] sm:$0xff]
        %v227 = vld [vmem:[%s1] sm:$0xff]
        %v228 = vld [vmem:[%s1 + $0x8] sm:$0xff]
        %v229 = vld [vmem:[%s1 + $0x10] sm:$0xff]
        %v230 = vld [vmem:[%s1 + $0x18] sm:$0xff]
        %vm231 = vcmask 261120
        %v233 = vsel %vm231, %v226, 0
        %235 = vmatprep.subr.mxu0 0.0
        %236 = vmatpush1.msra.mxu0 %v227
        %237 = vmatprep.subr.mxu0 0.0
        %238 = vmatpush1.msra.mxu0 %v228
        %239 = vmatprep.subr.mxu0 0.0
        %240 = vmatpush1.msra.mxu0 %v229
        %241 = vmatprep.subr.mxu0 0.0
        %242 = vmatpush1.msra.mxu0 %v230
        %243 = vmatprep.subr.mxu0 0.0
        %244 = vmatpush1.msra.mxu0 0.0
        %245 = vmatprep.subr.mxu0 0.0
        %246 = vmatpush1.msra.mxu0 0.0
        %247 = vmatprep.subr.mxu0 0.0
        %248 = vmatpush1.msra.mxu0 0.0
        %249 = vmatprep.subr.mxu0 0.0
        %250 = vmatpush1.msra.mxu0 0.0
        %251 = vmatprep.subr.mxu0 0.0
        %252 = vmatpush1.msra.mxu0 0.0
        %253 = vmatprep.subr.mxu0 0.0
        %254 = vmatpush1.msra.mxu0 0.0
        %255 = vmatprep.subr.mxu0 0.0
        %256 = vmatpush1.msra.mxu0 0.0
        %257 = vmatprep.subr.mxu0 0.0
        %258 = vmatpush1.msra.mxu0 0.0
        %259 = vmatprep.subr.mxu0 0.0
        %260 = vmatpush1.msra.mxu0 0.0
        %261 = vmatprep.subr.mxu0 0.0
        %262 = vmatpush1.msra.mxu0 0.0
        %263 = vmatprep.subr.mxu0 0.0
        %264 = vmatpush1.msra.mxu0 0.0
        %265 = vmatprep.subr.mxu0 0.0
        %266 = vmatpush1.msra.mxu0 0.0
        %267 = vmatprep.subr.mxu0 0.0
        %268 = vmatpush1.msra.mxu0 0.0
        %269 = vmatprep.subr.mxu0 0.0
        %270 = vmatpush1.msra.mxu0 0.0
        %271 = vmatprep.subr.mxu0 0.0
        %272 = vmatpush1.msra.mxu0 0.0
        %273 = vmatprep.subr.mxu0 0.0
        %274 = vmatpush1.msra.mxu0 0.0
        %275 = vmatprep.subr.mxu0 0.0
        %276 = vmatpush1.msra.mxu0 0.0
        %277 = vmatprep.subr.mxu0 0.0
        %278 = vmatpush1.msra.mxu0 0.0
        %279 = vmatprep.subr.mxu0 0.0
        %280 = vmatpush1.msra.mxu0 0.0
        %281 = vmatprep.subr.mxu0 0.0
        %282 = vmatpush1.msra.mxu0 0.0
        %283 = vmatprep.subr.mxu0 0.0
        %284 = vmatpush1.msra.mxu0 0.0
        %285 = vmatprep.subr.mxu0 0.0
        %286 = vmatpush1.msra.mxu0 0.0
        %287 = vmatprep.subr.mxu0 0.0
        %288 = vmatpush1.msra.mxu0 0.0
        %289 = vmatprep.subr.mxu0 0.0
        %290 = vmatpush1.msra.mxu0 0.0
        %291 = vmatprep.subr.mxu0 0.0
        %292 = vmatpush1.msra.mxu0 0.0
        %293 = vmatprep.subr.mxu0 0.0
        %294 = vmatpush1.msra.mxu0 0.0
        %295 = vmatprep.subr.mxu0 0.0
        %296 = vmatpush1.msra.mxu0 0.0
        %297 = vmatprep.subr.mxu0 0.0
        %298 = vmatpush1.msra.mxu0 0.0
        %299 = vmatprep.mubr.f32.mxu0 0.0
        %300 = vmatmul.mubr.f32.gmra.mrb[0].mxu0 %v233
        %v301 = vpop.f32.mrb[0].mxu0
        %v302 = vadd.f32 0.0, %v301
        %v303 = vpop.f32.mrb[0].mxu0
        %304 = vdwg.mxu0
        %305 = vrot.lane.b32.xlu0 %v226, 96
        %v306 = vpop.permute.xlu0 %305
        %v307 = vsel %vm231, %v306, 0
        %309 = vmatprep.subr.mxu0 0.0
        %310 = vmatpush1.msra.mxu0 %v227
        %311 = vmatprep.subr.mxu0 0.0
        %312 = vmatpush1.msra.mxu0 %v228
        %313 = vmatprep.subr.mxu0 0.0
        %314 = vmatpush1.msra.mxu0 %v229
        %315 = vmatprep.subr.mxu0 0.0
        %316 = vmatpush1.msra.mxu0 %v230
        %317 = vmatprep.subr.mxu0 0.0
        %318 = vmatpush1.msra.mxu0 0.0
        %319 = vmatprep.subr.mxu0 0.0
        %320 = vmatpush1.msra.mxu0 0.0
        %321 = vmatprep.subr.mxu0 0.0
        %322 = vmatpush1.msra.mxu0 0.0
        %323 = vmatprep.subr.mxu0 0.0
        %324 = vmatpush1.msra.mxu0 0.0
        %325 = vmatprep.subr.mxu0 0.0
        %326 = vmatpush1.msra.mxu0 0.0
        %327 = vmatprep.subr.mxu0 0.0
        %328 = vmatpush1.msra.mxu0 0.0
        %329 = vmatprep.subr.mxu0 0.0
        %330 = vmatpush1.msra.mxu0 0.0
        %331 = vmatprep.subr.mxu0 0.0
        %332 = vmatpush1.msra.mxu0 0.0
        %333 = vmatprep.subr.mxu0 0.0
        %334 = vmatpush1.msra.mxu0 0.0
        %335 = vmatprep.subr.mxu0 0.0
        %336 = vmatpush1.msra.mxu0 0.0
        %337 = vmatprep.subr.mxu0 0.0
        %338 = vmatpush1.msra.mxu0 0.0
        %339 = vmatprep.subr.mxu0 0.0
        %340 = vmatpush1.msra.mxu0 0.0
        %341 = vmatprep.subr.mxu0 0.0
        %342 = vmatpush1.msra.mxu0 0.0
        %343 = vmatprep.subr.mxu0 0.0
        %344 = vmatpush1.msra.mxu0 0.0
        %345 = vmatprep.subr.mxu0 0.0
        %346 = vmatpush1.msra.mxu0 0.0
        %347 = vmatprep.subr.mxu0 0.0
        %348 = vmatpush1.msra.mxu0 0.0
        %349 = vmatprep.subr.mxu0 0.0
        %350 = vmatpush1.msra.mxu0 0.0
        %351 = vmatprep.subr.mxu0 0.0
        %352 = vmatpush1.msra.mxu0 0.0
        %353 = vmatprep.subr.mxu0 0.0
        %354 = vmatpush1.msra.mxu0 0.0
        %355 = vmatprep.subr.mxu0 0.0
        %356 = vmatpush1.msra.mxu0 0.0
        %357 = vmatprep.subr.mxu0 0.0
        %358 = vmatpush1.msra.mxu0 0.0
        %359 = vmatprep.subr.mxu0 0.0
        %360 = vmatpush1.msra.mxu0 0.0
        %361 = vmatprep.subr.mxu0 0.0
        %362 = vmatpush1.msra.mxu0 0.0
        %363 = vmatprep.subr.mxu0 0.0
        %364 = vmatpush1.msra.mxu0 0.0
        %365 = vmatprep.subr.mxu0 0.0
        %366 = vmatpush1.msra.mxu0 0.0
        %367 = vmatprep.subr.mxu0 0.0
        %368 = vmatpush1.msra.mxu0 0.0
        %369 = vmatprep.subr.mxu0 0.0
        %370 = vmatpush1.msra.mxu0 0.0
        %371 = vmatprep.subr.mxu0 0.0
        %372 = vmatpush1.msra.mxu0 0.0
        %373 = vmatprep.mubr.f32.mxu0 0.0
        %374 = vmatmul.mubr.f32.gmra.mrb[0].mxu0 %v307
        %v375 = vpop.f32.mrb[0].mxu0
        %v376 = vadd.f32 0.0, %v375
        %v377 = vpop.f32.mrb[0].mxu0
        %378 = vdwg.mxu0
        %379 = vrot.lane.b32.xlu0 %v226, 64
        %v380 = vpop.permute.xlu0 %379
        %v381 = vsel %vm231, %v380, 0
        %383 = vmatprep.subr.mxu0 0.0
        %384 = vmatpush1.msra.mxu0 %v227
        %385 = vmatprep.subr.mxu0 0.0
        %386 = vmatpush1.msra.mxu0 %v228
        %387 = vmatprep.subr.mxu0 0.0
        %388 = vmatpush1.msra.mxu0 %v229
        %389 = vmatprep.subr.mxu0 0.0
        %390 = vmatpush1.msra.mxu0 %v230
        %391 = vmatprep.subr.mxu0 0.0
        %392 = vmatpush1.msra.mxu0 0.0
        %393 = vmatprep.subr.mxu0 0.0
        %394 = vmatpush1.msra.mxu0 0.0
        %395 = vmatprep.subr.mxu0 0.0
        %396 = vmatpush1.msra.mxu0 0.0
        %397 = vmatprep.subr.mxu0 0.0
        %398 = vmatpush1.msra.mxu0 0.0
        %399 = vmatprep.subr.mxu0 0.0
        %400 = vmatpush1.msra.mxu0 0.0
        %401 = vmatprep.subr.mxu0 0.0
        %402 = vmatpush1.msra.mxu0 0.0
        %403 = vmatprep.subr.mxu0 0.0
        %404 = vmatpush1.msra.mxu0 0.0
        %405 = vmatprep.subr.mxu0 0.0
        %406 = vmatpush1.msra.mxu0 0.0
        %407 = vmatprep.subr.mxu0 0.0
        %408 = vmatpush1.msra.mxu0 0.0
        %409 = vmatprep.subr.mxu0 0.0
        %410 = vmatpush1.msra.mxu0 0.0
        %411 = vmatprep.subr.mxu0 0.0
        %412 = vmatpush1.msra.mxu0 0.0
        %413 = vmatprep.subr.mxu0 0.0
        %414 = vmatpush1.msra.mxu0 0.0
        %415 = vmatprep.subr.mxu0 0.0
        %416 = vmatpush1.msra.mxu0 0.0
        %417 = vmatprep.subr.mxu0 0.0
        %418 = vmatpush1.msra.mxu0 0.0
        %419 = vmatprep.subr.mxu0 0.0
        %420 = vmatpush1.msra.mxu0 0.0
        %421 = vmatprep.subr.mxu0 0.0
        %422 = vmatpush1.msra.mxu0 0.0
        %423 = vmatprep.subr.mxu0 0.0
        %424 = vmatpush1.msra.mxu0 0.0
        %425 = vmatprep.subr.mxu0 0.0
        %426 = vmatpush1.msra.mxu0 0.0
        %427 = vmatprep.subr.mxu0 0.0
        %428 = vmatpush1.msra.mxu0 0.0
        %429 = vmatprep.subr.mxu0 0.0
        %430 = vmatpush1.msra.mxu0 0.0
        %431 = vmatprep.subr.mxu0 0.0
        %432 = vmatpush1.msra.mxu0 0.0
        %433 = vmatprep.subr.mxu0 0.0
        %434 = vmatpush1.msra.mxu0 0.0
        %435 = vmatprep.subr.mxu0 0.0
        %436 = vmatpush1.msra.mxu0 0.0
        %437 = vmatprep.subr.mxu0 0.0
        %438 = vmatpush1.msra.mxu0 0.0
        %439 = vmatprep.subr.mxu0 0.0
        %440 = vmatpush1.msra.mxu0 0.0
        %441 = vmatprep.subr.mxu0 0.0
        %442 = vmatpush1.msra.mxu0 0.0
        %443 = vmatprep.subr.mxu0 0.0
        %444 = vmatpush1.msra.mxu0 0.0
        %445 = vmatprep.subr.mxu0 0.0
        %446 = vmatpush1.msra.mxu0 0.0
        %447 = vmatprep.mubr.f32.mxu0 0.0
        %448 = vmatmul.mubr.f32.gmra.mrb[0].mxu0 %v381
        %v449 = vpop.f32.mrb[0].mxu0
        %v450 = vadd.f32 0.0, %v449
        %v451 = vpop.f32.mrb[0].mxu0
        %452 = vdwg.mxu0
        %453 = vrot.lane.b32.xlu0 %v226, 32
        %v454 = vpop.permute.xlu0 %453
        %v455 = vsel %vm231, %v454, 0
        %457 = vmatprep.subr.mxu0 0.0
        %458 = vmatpush1.msra.mxu0 %v227
        %459 = vmatprep.subr.mxu0 0.0
        %460 = vmatpush1.msra.mxu0 %v228
        %461 = vmatprep.subr.mxu0 0.0
        %462 = vmatpush1.msra.mxu0 %v229
        %463 = vmatprep.subr.mxu0 0.0
        %464 = vmatpush1.msra.mxu0 %v230
        %465 = vmatprep.subr.mxu0 0.0
        %466 = vmatpush1.msra.mxu0 0.0
        %467 = vmatprep.subr.mxu0 0.0
        %468 = vmatpush1.msra.mxu0 0.0
        %469 = vmatprep.subr.mxu0 0.0
        %470 = vmatpush1.msra.mxu0 0.0
        %471 = vmatprep.subr.mxu0 0.0
        %472 = vmatpush1.msra.mxu0 0.0
        %473 = vmatprep.subr.mxu0 0.0
        %474 = vmatpush1.msra.mxu0 0.0
        %475 = vmatprep.subr.mxu0 0.0
        %476 = vmatpush1.msra.mxu0 0.0
        %477 = vmatprep.subr.mxu0 0.0
        %478 = vmatpush1.msra.mxu0 0.0
        %479 = vmatprep.subr.mxu0 0.0
        %480 = vmatpush1.msra.mxu0 0.0
        %481 = vmatprep.subr.mxu0 0.0
        %482 = vmatpush1.msra.mxu0 0.0
        %483 = vmatprep.subr.mxu0 0.0
        %484 = vmatpush1.msra.mxu0 0.0
        %485 = vmatprep.subr.mxu0 0.0
        %486 = vmatpush1.msra.mxu0 0.0
        %487 = vmatprep.subr.mxu0 0.0
        %488 = vmatpush1.msra.mxu0 0.0
        %489 = vmatprep.subr.mxu0 0.0
        %490 = vmatpush1.msra.mxu0 0.0
        %491 = vmatprep.subr.mxu0 0.0
        %492 = vmatpush1.msra.mxu0 0.0
        %493 = vmatprep.subr.mxu0 0.0
        %494 = vmatpush1.msra.mxu0 0.0
        %495 = vmatprep.subr.mxu0 0.0
        %496 = vmatpush1.msra.mxu0 0.0
        %497 = vmatprep.subr.mxu0 0.0
        %498 = vmatpush1.msra.mxu0 0.0
        %499 = vmatprep.subr.mxu0 0.0
        %500 = vmatpush1.msra.mxu0 0.0
        %501 = vmatprep.subr.mxu0 0.0
        %502 = vmatpush1.msra.mxu0 0.0
        %503 = vmatprep.subr.mxu0 0.0
        %504 = vmatpush1.msra.mxu0 0.0
        %505 = vmatprep.subr.mxu0 0.0
        %506 = vmatpush1.msra.mxu0 0.0
        %507 = vmatprep.subr.mxu0 0.0
        %508 = vmatpush1.msra.mxu0 0.0
        %509 = vmatprep.subr.mxu0 0.0
        %510 = vmatpush1.msra.mxu0 0.0
        %511 = vmatprep.subr.mxu0 0.0
        %512 = vmatpush1.msra.mxu0 0.0
        %513 = vmatprep.subr.mxu0 0.0
        %514 = vmatpush1.msra.mxu0 0.0
        %515 = vmatprep.subr.mxu0 0.0
        %516 = vmatpush1.msra.mxu0 0.0
        %517 = vmatprep.subr.mxu0 0.0
        %518 = vmatpush1.msra.mxu0 0.0
        %519 = vmatprep.subr.mxu0 0.0
        %520 = vmatpush1.msra.mxu0 0.0
        %521 = vmatprep.mubr.f32.mxu0 0.0
        %522 = vmatmul.mubr.f32.gmra.mrb[0].mxu0 %v455
        %v523 = vpop.f32.mrb[0].mxu0
        %v524 = vadd.f32 0.0, %v523
        %v525 = vpop.f32.mrb[0].mxu0
        %526 = vdwg.mxu0
        %v527 = vcombine.high %v226, %v226
        %v528 = vsel %vm231, %v527, 0
        %530 = vmatprep.subr.mxu0 0.0
        %531 = vmatpush1.msra.mxu0 %v227
        %532 = vmatprep.subr.mxu0 0.0
        %533 = vmatpush1.msra.mxu0 %v228
        %534 = vmatprep.subr.mxu0 0.0
        %535 = vmatpush1.msra.mxu0 %v229
        %536 = vmatprep.subr.mxu0 0.0
        %537 = vmatpush1.msra.mxu0 %v230
        %538 = vmatprep.subr.mxu0 0.0
        %539 = vmatpush1.msra.mxu0 0.0
        %540 = vmatprep.subr.mxu0 0.0
        %541 = vmatpush1.msra.mxu0 0.0
        %542 = vmatprep.subr.mxu0 0.0
        %543 = vmatpush1.msra.mxu0 0.0
        %544 = vmatprep.subr.mxu0 0.0
        %545 = vmatpush1.msra.mxu0 0.0
        %546 = vmatprep.subr.mxu0 0.0
        %547 = vmatpush1.msra.mxu0 0.0
        %548 = vmatprep.subr.mxu0 0.0
        %549 = vmatpush1.msra.mxu0 0.0
        %550 = vmatprep.subr.mxu0 0.0
        %551 = vmatpush1.msra.mxu0 0.0
        %552 = vmatprep.subr.mxu0 0.0
        %553 = vmatpush1.msra.mxu0 0.0
        %554 = vmatprep.subr.mxu0 0.0
        %555 = vmatpush1.msra.mxu0 0.0
        %556 = vmatprep.subr.mxu0 0.0
        %557 = vmatpush1.msra.mxu0 0.0
        %558 = vmatprep.subr.mxu0 0.0
        %559 = vmatpush1.msra.mxu0 0.0
        %560 = vmatprep.subr.mxu0 0.0
        %561 = vmatpush1.msra.mxu0 0.0
        %562 = vmatprep.subr.mxu0 0.0
        %563 = vmatpush1.msra.mxu0 0.0
        %564 = vmatprep.subr.mxu0 0.0
        %565 = vmatpush1.msra.mxu0 0.0
        %566 = vmatprep.subr.mxu0 0.0
        %567 = vmatpush1.msra.mxu0 0.0
        %568 = vmatprep.subr.mxu0 0.0
        %569 = vmatpush1.msra.mxu0 0.0
        %570 = vmatprep.subr.mxu0 0.0
        %571 = vmatpush1.msra.mxu0 0.0
        %572 = vmatprep.subr.mxu0 0.0
        %573 = vmatpush1.msra.mxu0 0.0
        %574 = vmatprep.subr.mxu0 0.0
        %575 = vmatpush1.msra.mxu0 0.0
        %576 = vmatprep.subr.mxu0 0.0
        %577 = vmatpush1.msra.mxu0 0.0
        %578 = vmatprep.subr.mxu0 0.0
        %579 = vmatpush1.msra.mxu0 0.0
        %580 = vmatprep.subr.mxu0 0.0
        %581 = vmatpush1.msra.mxu0 0.0
        %582 = vmatprep.subr.mxu0 0.0
        %583 = vmatpush1.msra.mxu0 0.0
        %584 = vmatprep.subr.mxu0 0.0
        %585 = vmatpush1.msra.mxu0 0.0
        %586 = vmatprep.subr.mxu0 0.0
        %587 = vmatpush1.msra.mxu0 0.0
        %588 = vmatprep.subr.mxu0 0.0
        %589 = vmatpush1.msra.mxu0 0.0
        %590 = vmatprep.subr.mxu0 0.0
        %591 = vmatpush1.msra.mxu0 0.0
        %592 = vmatprep.subr.mxu0 0.0
        %593 = vmatpush1.msra.mxu0 0.0
        %594 = vmatprep.mubr.f32.mxu0 0.0
        %595 = vmatmul.mubr.f32.gmra.mrb[0].mxu0 %v528
        %v596 = vpop.f32.mrb[0].mxu0
        %v597 = vadd.f32 0.0, %v596
        %v598 = vpop.f32.mrb[0].mxu0
        %599 = vdwg.mxu0
        %600 = vrot.lane.b32.xlu0 %v527, 96
        %v601 = vpop.permute.xlu0 %600
        %v602 = vsel %vm231, %v601, 0
        %604 = vmatprep.subr.mxu0 0.0
        %605 = vmatpush1.msra.mxu0 %v227
        %606 = vmatprep.subr.mxu0 0.0
        %607 = vmatpush1.msra.mxu0 %v228
        %608 = vmatprep.subr.mxu0 0.0
        %609 = vmatpush1.msra.mxu0 %v229
        %610 = vmatprep.subr.mxu0 0.0
        %611 = vmatpush1.msra.mxu0 %v230
        %612 = vmatprep.subr.mxu0 0.0
        %613 = vmatpush1.msra.mxu0 0.0
        %614 = vmatprep.subr.mxu0 0.0
        %615 = vmatpush1.msra.mxu0 0.0
        %616 = vmatprep.subr.mxu0 0.0
        %617 = vmatpush1.msra.mxu0 0.0
        %618 = vmatprep.subr.mxu0 0.0
        %619 = vmatpush1.msra.mxu0 0.0
        %620 = vmatprep.subr.mxu0 0.0
        %621 = vmatpush1.msra.mxu0 0.0
        %622 = vmatprep.subr.mxu0 0.0
        %623 = vmatpush1.msra.mxu0 0.0
        %624 = vmatprep.subr.mxu0 0.0
        %625 = vmatpush1.msra.mxu0 0.0
        %626 = vmatprep.subr.mxu0 0.0
        %627 = vmatpush1.msra.mxu0 0.0
        %628 = vmatprep.subr.mxu0 0.0
        %629 = vmatpush1.msra.mxu0 0.0
        %630 = vmatprep.subr.mxu0 0.0
        %631 = vmatpush1.msra.mxu0 0.0
        %632 = vmatprep.subr.mxu0 0.0
        %633 = vmatpush1.msra.mxu0 0.0
        %634 = vmatprep.subr.mxu0 0.0
        %635 = vmatpush1.msra.mxu0 0.0
        %636 = vmatprep.subr.mxu0 0.0
        %637 = vmatpush1.msra.mxu0 0.0
        %638 = vmatprep.subr.mxu0 0.0
        %639 = vmatpush1.msra.mxu0 0.0
        %640 = vmatprep.subr.mxu0 0.0
        %641 = vmatpush1.msra.mxu0 0.0
        %642 = vmatprep.subr.mxu0 0.0
        %643 = vmatpush1.msra.mxu0 0.0
        %644 = vmatprep.subr.mxu0 0.0
        %645 = vmatpush1.msra.mxu0 0.0
        %646 = vmatprep.subr.mxu0 0.0
        %647 = vmatpush1.msra.mxu0 0.0
        %648 = vmatprep.subr.mxu0 0.0
        %649 = vmatpush1.msra.mxu0 0.0
        %650 = vmatprep.subr.mxu0 0.0
        %651 = vmatpush1.msra.mxu0 0.0
        %652 = vmatprep.subr.mxu0 0.0
        %653 = vmatpush1.msra.mxu0 0.0
        %654 = vmatprep.subr.mxu0 0.0
        %655 = vmatpush1.msra.mxu0 0.0
        %656 = vmatprep.subr.mxu0 0.0
        %657 = vmatpush1.msra.mxu0 0.0
        %658 = vmatprep.subr.mxu0 0.0
        %659 = vmatpush1.msra.mxu0 0.0
        %660 = vmatprep.subr.mxu0 0.0
        %661 = vmatpush1.msra.mxu0 0.0
        %662 = vmatprep.subr.mxu0 0.0
        %663 = vmatpush1.msra.mxu0 0.0
        %664 = vmatprep.subr.mxu0 0.0
        %665 = vmatpush1.msra.mxu0 0.0
        %666 = vmatprep.subr.mxu0 0.0
        %667 = vmatpush1.msra.mxu0 0.0
        %668 = vmatprep.mubr.f32.mxu0 0.0
        %669 = vmatmul.mubr.f32.gmra.mrb[0].mxu0 %v602
        %v670 = vpop.f32.mrb[0].mxu0
        %v671 = vadd.f32 0.0, %v670
        %v672 = vpop.f32.mrb[0].mxu0
        %673 = vdwg.mxu0
        %674 = vrot.lane.b32.xlu0 %v527, 64
        %v675 = vpop.permute.xlu0 %674
        %v676 = vsel %vm231, %v675, 0
        %678 = vmatprep.subr.mxu0 0.0
        %679 = vmatpush1.msra.mxu0 %v227
        %680 = vmatprep.subr.mxu0 0.0
        %681 = vmatpush1.msra.mxu0 %v228
        %682 = vmatprep.subr.mxu0 0.0
        %683 = vmatpush1.msra.mxu0 %v229
        %684 = vmatprep.subr.mxu0 0.0
        %685 = vmatpush1.msra.mxu0 %v230
        %686 = vmatprep.subr.mxu0 0.0
        %687 = vmatpush1.msra.mxu0 0.0
        %688 = vmatprep.subr.mxu0 0.0
        %689 = vmatpush1.msra.mxu0 0.0
        %690 = vmatprep.subr.mxu0 0.0
        %691 = vmatpush1.msra.mxu0 0.0
        %692 = vmatprep.subr.mxu0 0.0
        %693 = vmatpush1.msra.mxu0 0.0
        %694 = vmatprep.subr.mxu0 0.0
        %695 = vmatpush1.msra.mxu0 0.0
        %696 = vmatprep.subr.mxu0 0.0
        %697 = vmatpush1.msra.mxu0 0.0
        %698 = vmatprep.subr.mxu0 0.0
        %699 = vmatpush1.msra.mxu0 0.0
        %700 = vmatprep.subr.mxu0 0.0
        %701 = vmatpush1.msra.mxu0 0.0
        %702 = vmatprep.subr.mxu0 0.0
        %703 = vmatpush1.msra.mxu0 0.0
        %704 = vmatprep.subr.mxu0 0.0
        %705 = vmatpush1.msra.mxu0 0.0
        %706 = vmatprep.subr.mxu0 0.0
        %707 = vmatpush1.msra.mxu0 0.0
        %708 = vmatprep.subr.mxu0 0.0
        %709 = vmatpush1.msra.mxu0 0.0
        %710 = vmatprep.subr.mxu0 0.0
        %711 = vmatpush1.msra.mxu0 0.0
        %712 = vmatprep.subr.mxu0 0.0
        %713 = vmatpush1.msra.mxu0 0.0
        %714 = vmatprep.subr.mxu0 0.0
        %715 = vmatpush1.msra.mxu0 0.0
        %716 = vmatprep.subr.mxu0 0.0
        %717 = vmatpush1.msra.mxu0 0.0
        %718 = vmatprep.subr.mxu0 0.0
        %719 = vmatpush1.msra.mxu0 0.0
        %720 = vmatprep.subr.mxu0 0.0
        %721 = vmatpush1.msra.mxu0 0.0
        %722 = vmatprep.subr.mxu0 0.0
        %723 = vmatpush1.msra.mxu0 0.0
        %724 = vmatprep.subr.mxu0 0.0
        %725 = vmatpush1.msra.mxu0 0.0
        %726 = vmatprep.subr.mxu0 0.0
        %727 = vmatpush1.msra.mxu0 0.0
        %728 = vmatprep.subr.mxu0 0.0
        %729 = vmatpush1.msra.mxu0 0.0
        %730 = vmatprep.subr.mxu0 0.0
        %731 = vmatpush1.msra.mxu0 0.0
        %732 = vmatprep.subr.mxu0 0.0
        %733 = vmatpush1.msra.mxu0 0.0
        %734 = vmatprep.subr.mxu0 0.0
        %735 = vmatpush1.msra.mxu0 0.0
        %736 = vmatprep.subr.mxu0 0.0
        %737 = vmatpush1.msra.mxu0 0.0
        %738 = vmatprep.subr.mxu0 0.0
        %739 = vmatpush1.msra.mxu0 0.0
        %740 = vmatprep.subr.mxu0 0.0
        %741 = vmatpush1.msra.mxu0 0.0
        %742 = vmatprep.mubr.f32.mxu0 0.0
        %743 = vmatmul.mubr.f32.gmra.mrb[0].mxu0 %v676
        %v744 = vpop.f32.mrb[0].mxu0
        %v745 = vadd.f32 0.0, %v744
        %v746 = vpop.f32.mrb[0].mxu0
        %747 = vdwg.mxu0
        %748 = vrot.lane.b32.xlu0 %v527, 32
        %v749 = vpop.permute.xlu0 %748
        %v750 = vsel %vm231, %v749, 0
        %752 = vmatprep.subr.mxu0 0.0
        %753 = vmatpush1.msra.mxu0 %v227
        %754 = vmatprep.subr.mxu0 0.0
        %755 = vmatpush1.msra.mxu0 %v228
        %756 = vmatprep.subr.mxu0 0.0
        %757 = vmatpush1.msra.mxu0 %v229
        %758 = vmatprep.subr.mxu0 0.0
        %759 = vmatpush1.msra.mxu0 %v230
        %760 = vmatprep.subr.mxu0 0.0
        %761 = vmatpush1.msra.mxu0 0.0
        %762 = vmatprep.subr.mxu0 0.0
        %763 = vmatpush1.msra.mxu0 0.0
        %764 = vmatprep.subr.mxu0 0.0
        %765 = vmatpush1.msra.mxu0 0.0
        %766 = vmatprep.subr.mxu0 0.0
        %767 = vmatpush1.msra.mxu0 0.0
        %768 = vmatprep.subr.mxu0 0.0
        %769 = vmatpush1.msra.mxu0 0.0
        %770 = vmatprep.subr.mxu0 0.0
        %771 = vmatpush1.msra.mxu0 0.0
        %772 = vmatprep.subr.mxu0 0.0
        %773 = vmatpush1.msra.mxu0 0.0
        %774 = vmatprep.subr.mxu0 0.0
        %775 = vmatpush1.msra.mxu0 0.0
        %776 = vmatprep.subr.mxu0 0.0
        %777 = vmatpush1.msra.mxu0 0.0
        %778 = vmatprep.subr.mxu0 0.0
        %779 = vmatpush1.msra.mxu0 0.0
        %780 = vmatprep.subr.mxu0 0.0
        %781 = vmatpush1.msra.mxu0 0.0
        %782 = vmatprep.subr.mxu0 0.0
        %783 = vmatpush1.msra.mxu0 0.0
        %784 = vmatprep.subr.mxu0 0.0
        %785 = vmatpush1.msra.mxu0 0.0
        %786 = vmatprep.subr.mxu0 0.0
        %787 = vmatpush1.msra.mxu0 0.0
        %788 = vmatprep.subr.mxu0 0.0
        %789 = vmatpush1.msra.mxu0 0.0
        %790 = vmatprep.subr.mxu0 0.0
        %791 = vmatpush1.msra.mxu0 0.0
        %792 = vmatprep.subr.mxu0 0.0
        %793 = vmatpush1.msra.mxu0 0.0
        %794 = vmatprep.subr.mxu0 0.0
        %795 = vmatpush1.msra.mxu0 0.0
        %796 = vmatprep.subr.mxu0 0.0
        %797 = vmatpush1.msra.mxu0 0.0
        %798 = vmatprep.subr.mxu0 0.0
        %799 = vmatpush1.msra.mxu0 0.0
        %800 = vmatprep.subr.mxu0 0.0
        %801 = vmatpush1.msra.mxu0 0.0
        %802 = vmatprep.subr.mxu0 0.0
        %803 = vmatpush1.msra.mxu0 0.0
        %804 = vmatprep.subr.mxu0 0.0
        %805 = vmatpush1.msra.mxu0 0.0
        %806 = vmatprep.subr.mxu0 0.0
        %807 = vmatpush1.msra.mxu0 0.0
        %808 = vmatprep.subr.mxu0 0.0
        %809 = vmatpush1.msra.mxu0 0.0
        %810 = vmatprep.subr.mxu0 0.0
        %811 = vmatpush1.msra.mxu0 0.0
        %812 = vmatprep.subr.mxu0 0.0
        %813 = vmatpush1.msra.mxu0 0.0
        %814 = vmatprep.subr.mxu0 0.0
        %815 = vmatpush1.msra.mxu0 0.0
        %816 = vmatprep.mubr.f32.mxu0 0.0
        %817 = vmatmul.mubr.f32.gmra.mrb[0].mxu0 %v750
        %v818 = vpop.f32.mrb[0].mxu0
        %v819 = vadd.f32 0.0, %v818
        %v820 = vpop.f32.mrb[0].mxu0
        %821 = vdwg.mxu0
        %823 = vrot.lane.b32.xlu0 %v376, 8
        %v824 = vpop.permute.xlu0 %823
        %827 = vrot.lane.b32.xlu0 %v450, 16
        %v828 = vpop.permute.xlu0 %827
        %831 = vrot.lane.b32.xlu0 %v524, 24
        %v832 = vpop.permute.xlu0 %831
        %835 = vrot.lane.b32.xlu0 %v597, 32
        %v836 = vpop.permute.xlu0 %835
        %839 = vrot.lane.b32.xlu0 %v671, 40
        %v840 = vpop.permute.xlu0 %839
        %843 = vrot.lane.b32.xlu0 %v745, 48
        %v844 = vpop.permute.xlu0 %843
        %847 = vrot.lane.b32.xlu0 %v819, 56
        %v848 = vpop.permute.xlu0 %847
        %vm850 = vcmask 64512
        %v851 = vsel %vm850, %v302, %v824
        %vm852 = vcmask 130048
        %v853 = vsel %vm852, %v851, %v828
        %vm854 = vcmask 195584
        %v855 = vsel %vm854, %v853, %v832
        %v856 = vsel %vm231, %v855, %v836
        %vm857 = vcmask 326656
        %v858 = vsel %vm857, %v856, %v840
        %vm859 = vcmask 392192
        %v860 = vsel %vm859, %v858, %v844
        %vm861 = vcmask 457728
        %v862 = vsel %vm861, %v860, %v848
        %v863 = vld [vmem:[%s2] sm:$0xff]
        %v864 = vld [vmem:[%s3] sm:$0xff]
        %866 = vset.pattern.permute.xlu0 0
        %867 = vperm.xlu0 %866, %v864
        %v868 = vpop.permute.xlu0 %867
        %vm870 = vcmask 31744
        %v872 = vsel %vm870, %v863, 0
        %vm874 = vcmask 1043456
        %v876 = vsel %vm874, %v862, 0
        %878 = vmatprep.subr.mxu0 0.0
        %879 = vmatpush1.msra.mxu0 %v876
        %880 = vmatprep.subr.mxu0 0.0
        %881 = vmatpush1.msra.mxu0 0.0
        %882 = vmatprep.subr.mxu0 0.0
        %883 = vmatpush1.msra.mxu0 0.0
        %884 = vmatprep.subr.mxu0 0.0
        %885 = vmatpush1.msra.mxu0 0.0
        %886 = vmatprep.subr.mxu0 0.0
        %887 = vmatpush1.msra.mxu0 0.0
        %888 = vmatprep.subr.mxu0 0.0
        %889 = vmatpush1.msra.mxu0 0.0
        %890 = vmatprep.subr.mxu0 0.0
        %891 = vmatpush1.msra.mxu0 0.0
        %892 = vmatprep.subr.mxu0 0.0
        %893 = vmatpush1.msra.mxu0 0.0
        %894 = vmatprep.subr.mxu0 0.0
        %895 = vmatpush1.msra.mxu0 0.0
        %896 = vmatprep.subr.mxu0 0.0
        %897 = vmatpush1.msra.mxu0 0.0
        %898 = vmatprep.subr.mxu0 0.0
        %899 = vmatpush1.msra.mxu0 0.0
        %900 = vmatprep.subr.mxu0 0.0
        %901 = vmatpush1.msra.mxu0 0.0
        %902 = vmatprep.subr.mxu0 0.0
        %903 = vmatpush1.msra.mxu0 0.0
        %904 = vmatprep.subr.mxu0 0.0
        %905 = vmatpush1.msra.mxu0 0.0
        %906 = vmatprep.subr.mxu0 0.0
        %907 = vmatpush1.msra.mxu0 0.0
        %908 = vmatprep.subr.mxu0 0.0
        %909 = vmatpush1.msra.mxu0 0.0
        %910 = vmatprep.subr.mxu0 0.0
        %911 = vmatpush1.msra.mxu0 0.0
        %912 = vmatprep.subr.mxu0 0.0
        %913 = vmatpush1.msra.mxu0 0.0
        %914 = vmatprep.subr.mxu0 0.0
        %915 = vmatpush1.msra.mxu0 0.0
        %916 = vmatprep.subr.mxu0 0.0
        %917 = vmatpush1.msra.mxu0 0.0
        %918 = vmatprep.subr.mxu0 0.0
        %919 = vmatpush1.msra.mxu0 0.0
        %920 = vmatprep.subr.mxu0 0.0
        %921 = vmatpush1.msra.mxu0 0.0
        %922 = vmatprep.subr.mxu0 0.0
        %923 = vmatpush1.msra.mxu0 0.0
        %924 = vmatprep.subr.mxu0 0.0
        %925 = vmatpush1.msra.mxu0 0.0
        %926 = vmatprep.subr.mxu0 0.0
        %927 = vmatpush1.msra.mxu0 0.0
        %928 = vmatprep.subr.mxu0 0.0
        %929 = vmatpush1.msra.mxu0 0.0
        %930 = vmatprep.subr.mxu0 0.0
        %931 = vmatpush1.msra.mxu0 0.0
        %932 = vmatprep.subr.mxu0 0.0
        %933 = vmatpush1.msra.mxu0 0.0
        %934 = vmatprep.subr.mxu0 0.0
        %935 = vmatpush1.msra.mxu0 0.0
        %936 = vmatprep.subr.mxu0 0.0
        %937 = vmatpush1.msra.mxu0 0.0
        %938 = vmatprep.subr.mxu0 0.0
        %939 = vmatpush1.msra.mxu0 0.0
        %940 = vmatprep.subr.mxu0 0.0
        %941 = vmatpush1.msra.mxu0 0.0
        %942 = vmatprep.mubr.f32.mxu0 0.0
        %943 = vmatmul.mubr.f32.gmra.mrb[0].mxu0 %v872
        %v944 = vpop.f32.mrb[0].mxu0
        %v945 = vadd.f32 %v868, %v944
        %v946 = vpop.f32.mrb[0].mxu0
        %947 = vdwg.mxu0
        %vm948 = vcmask 523264
        %949 = vst.msk [vmem:[%s215] sm:$0xff] %vm948, %v945
        %s950 = sand.u32 %s131, 1
        %s951 = scalar_lea.sflag [#allocation3], %s950
        %s952 = sand.u32 %s131, 1
        %s953 = smul.addr %s952, 8
        %s954 = scalar_lea.vmem [#allocation2], %s953
        // Predicated region
        $region37: #{tpu_custom_call.1} parent=35 // pred_check
          %p955 = pneg %p141
        $region38: #{tpu_custom_call.1} parent=35 // pred_check_branch
          %957 = sbr.rel (%p955) target = $region40
        $region39: #{tpu_custom_call.1} parent=35 // pred_region
          %s959 = ssub.s32 128, 128
          %960 = vsyncadd %s951, %s959
          %s961 = sadd.s32 %s23, %s22
          %s962 = smul.addr %s961, 128
          %s963 = scalar_lea.hbm %s4, %s962
          %s965 = sshll.u32 %s954, 4
          %s966 = int_to_ptr.vmem [resolvable:$true] %s965
          %968 = dma.vmem_to_hbm [thread:$0]  %s966, 128, %s963, %s951
        $region40: #{tpu_custom_call.1} parent=35 // pred_fallthru
          _
      $region36: #{tpu_custom_call.1} parent=5 // pred_fallthru
        _
      %p969 = scmp.le.s32.totalorder 2, %s13
      // Predicated region
      $region41: #{tpu_custom_call.1} parent=5 // pred_check
        %p970 = pneg %p969
      $region42: #{tpu_custom_call.1} parent=5 // pred_check_branch
        %972 = sbr.rel (%p970) target = $region44
      $region43: #{tpu_custom_call.1} parent=5 // pred_region
        %s973 = ssub.s32 %s13, 2
        // Predicated region
        $region45: #{tpu_custom_call.1} parent=43 // pred_check
          %p974 = pneg %p147
        $region46: #{tpu_custom_call.1} parent=43 // pred_check_branch
          %976 = sbr.rel (%p974) target = $region48
        $region47: #{tpu_custom_call.1} parent=43 // pred_region
          %s977 = sand.u32 %s132, 1
          %s978 = scalar_lea.sflag [#allocation3], %s977
          %s979 = sand.u32 %s132, 1
          %s980 = smul.addr %s979, 8
          %s981 = scalar_lea.vmem [#allocation2], %s980
          %982 = dma.done %s978, 128
        $region48: #{tpu_custom_call.1} parent=43 // pred_fallthru
          _
      $region44: #{tpu_custom_call.1} parent=5 // pred_fallthru
        _
    $region6: #{tpu_custom_call.1} parent=1 // loop_footer
      %s17 = sadd.s32 1, %s13
    $region7: #{tpu_custom_call.1} parent=1 // loop_footer_branch
      %12 = sbr.rel target = $region3
    $region8: #{tpu_custom_call.1} parent=1 // loop_exit
      _
    %983 = vsyncpa [#allocation3], 1
    %s984 = scalar_lea.sflag [#allocation3], 1
    %985 = vsyncpa %s984, 1

</llo_original>
